<compile_context>
chip_gen: v6e
topology: v6e:2x2x1
jax: 0.10.0
libtpu: 0.0.40
codegen_flags: <defaults>
</compile_context>

<pallas_src>
import functools

import jax
import jax.numpy as jnp
import numpy as np
from jax.experimental import pallas as pl
from jax.experimental.pallas import tpu as pltpu

MID = 4  # mid_channels in CSAM


# ---------------------------------------------------------------------------
# kernel
# ---------------------------------------------------------------------------
def _csam_kernel(x_ref, m_ref, aux_ref, o_ref, *, W, C):
    """x_ref/o_ref: (Rb, W*C) slab, Rb = nb*H image rows (nb whole images).
    m_ref : (W*C, 3*W*C) folded-weight matrix; column block kh holds the
            horizontal stencil + channel reduction for vertical tap kh.
    aux_ref: (Rb, 8) per-row constants:
            [:,0] top_keep  (0 on the first row of each image)
            [:,1] bot_keep  (0 on the last row of each image)
            [:,2] row_bias  (folded conv1 bias, interior-w value)
            [:,3] left_corr (bias correction for pixel column w == 0)
            [:,4] right_corr(bias correction for pixel column w == W-1)
    """
    WC = W * C
    Rb = x_ref.shape[0]

    x = x_ref[...].astype(jnp.float32)
    y = jnp.maximum(x, 0.0)                                   # ReLU (VPU)

    # Horizontal 3-tap stencil + per-pixel channel reduction + broadcast over
    # each pixel's C lanes, for all three vertical taps: one MXU matmul.
    t = jnp.dot(y, m_ref[...], preferred_element_type=jnp.float32,
                precision=jax.lax.Precision.HIGHEST)          # (Rb, 3*WC)
    t0 = t[:, 0 * WC:1 * WC]   # contribution of source row r to output row r+1
    t1 = t[:, 1 * WC:2 * WC]   # ... to output row r
    t2 = t[:, 2 * WC:3 * WC]   # ... to output row r-1

    aux = aux_ref[...]
    top_keep = aux[:, 0:1]
    bot_keep = aux[:, 1:2]
    row_bias = aux[:, 2:3]
    left_corr = aux[:, 3:4]
    right_corr = aux[:, 4:5]

    # Vertical taps via sublane rolls (XLU slot); image-border rows masked with
    # per-row keep columns (no integer modulo).
    s = t1
    s = s + top_keep * pltpu.roll(t0, 1, axis=0)
    s = s + bot_keep * pltpu.roll(t2, Rb - 1, axis=0)

    # Folded conv1 bias: per-row value + left/right pixel-column corrections
    # (conv2 zero-pads AFTER the bias is added, so border pixels see fewer taps).
    lane = jax.lax.broadcasted_iota(jnp.int32, (1, WC), 1)
    left_mask = (lane < C).astype(jnp.float32)
    right_mask = (lane >= (W - 1) * C).astype(jnp.float32)
    s = s + row_bias + left_corr * left_mask + right_corr * right_mask

    # sigmoid(s) = 0.5*(tanh(s/2)+1): tanh rides the otherwise idle EUP slot
    # instead of an f32 VALU divide.
    gate = 0.5 * jnp.tanh(0.5 * s) + 0.5
    o_ref[...] = (x * gate).astype(o_ref.dtype)


# ---------------------------------------------------------------------------
# wrappers
# ---------------------------------------------------------------------------
def _tpu_kind():
    try:
        d = jax.devices()[0]
        return d.device_kind.lower() if d.platform == "tpu" else ""
    except Exception:
        return ""


def _pick_block_batch(n, h, wc, itemsize, *, max_block_bytes, prefer_two_steps):
    """Largest images-per-step nb whose (nb*h, wc) tile fits the byte budget and
    keeps legal (8,128) block alignment; optionally keep >=2 grid steps so both
    v7x TensorCores get work via the 'parallel' grid axis."""
    best = 1
    for nb in range(1, n + 1):
        if n % nb:
            continue
        rows = nb * h
        if rows % 8 and nb != n:
            continue
        if rows * wc * itemsize > max_block_bytes:
            continue
        if prefer_two_steps and n > 1 and (n // nb) < 2:
            continue
        best = nb
    if (best * h) % 8 and best != n:       # last-resort alignment fallback
        best = n
    return best


def csam_pallas_nhwc(x, w1_cm, b1, w2_kjm):
    """x: (N,H,W,C); w1_cm: (C,MID); b1: (MID,); w2_kjm: (3,3,MID) -> (N,H,W,C)."""
    N, H, W, C = x.shape
    WC = W * C
    f32 = jnp.float32

    # ---- fold the two convs (wrapper-side weight prep, done once) ----
    w_eff = jnp.einsum('cm,kjm->kjc', w1_cm.astype(f32), w2_kjm.astype(f32))  # (3,3,C)
    b_tap = jnp.einsum('m,kjm->kj', b1.astype(f32), w2_kjm.astype(f32))       # (3,3)

    # Constant (WC, 3*WC) matrix: column block kh maps relu(x) lanes (w', c')
    # of one slab row to per-pixel gate-logit lanes (w, c_out):
    #   M[kh][w'*C + c', w*C + c_out] = w_eff[kh, w' - w + 1, c']  if |w - w'| <= 1
    # independent of c_out (this also broadcasts the logit over the channel lanes);
    # width-border zeros come for free from the matrix structure.
    wp = jnp.arange(W)
    kw_idx = wp[:, None] - wp[None, :] + 1                    # [w', w] = w' - w + 1
    valid = (kw_idx >= 0) & (kw_idx <= 2)
    kw_c = jnp.clip(kw_idx, 0, 2)
    mats = []
    for kh in range(3):
        mk = w_eff[kh][kw_c]                                  # (W, W, C) [w', w, c']
        mk = jnp.where(valid[:, :, None], mk, 0.0)
        mk = jnp.transpose(mk, (0, 2, 1))                     # (W, C', W)
        mk = jnp.broadcast_to(mk[:, :, :, None], (W, C, W, C))
        mats.append(mk.reshape(WC, WC))
    m_all = jnp.concatenate(mats, axis=1)                     # (WC, 3*WC)

    # ---- tiny per-row aux: image-border keep masks + folded bias terms ----
    hs = jnp.arange(H)
    hv = jnp.stack([((hs + k - 1 >= 0) & (hs + k - 1 < H)).astype(f32)
                    for k in range(3)], axis=1)               # (H, 3) valid kh taps
    row_bias = hv @ jnp.sum(b_tap, axis=1)                    # interior-w bias
    left_corr = -(hv @ b_tap[:, 0])                           # w == 0 correction
    right_corr = -(hv @ b_tap[:, 2])                          # w == W-1 correction
    top_keep = (hs != 0).astype(f32)
    bot_keep = (hs != H - 1).astype(f32)
    zeros = jnp.zeros((H,), f32)
    aux_h = jnp.stack([top_keep, bot_keep, row_bias, left_corr, right_corr,
                       zeros, zeros, zeros], axis=1)          # (H, 8)

    # ---- generation-aware tiling ----
    kind = _tpu_kind()
    is_v7x = ("v7" in kind) or ("7x" in kind)
    max_block_bytes = (2 << 20) if is_v7x else (4 << 20)      # 64 vs 128 MiB VMEM
    nb = _pick_block_batch(N, H, WC, x.dtype.itemsize,
                           max_block_bytes=max_block_bytes,
                           prefer_two_steps=is_v7x or kind == "")
    rb = nb * H
    aux = jnp.tile(aux_h, (nb, 1))                            # (rb, 8)

    # Explicit VMEM budget: 2x in + 2x out double buffers, 2x weight matrix,
    # plus f32 temporaries the stencil/rolls force to materialize.
    tile_io = rb * WC * x.dtype.itemsize
    tile_f32 = rb * WC * 4
    est = 4 * tile_io + 2 * (WC * 3 * WC * 4) + 12 * tile_f32 + 4 * rb * 8 * 4
    vmem_cap = (56 << 20) if is_v7x else (100 << 20)
    vmem_limit = int(min(max(est, 32 << 20), vmem_cap))

    x2 = x.reshape(N * H, WC)                                 # lane-dense slab

    kernel = functools.partial(_csam_kernel, W=W, C=C)
    out2 = pl.pallas_call(
        kernel,
        out_shape=jax.ShapeDtypeStruct((N * H, WC), x.dtype),
        grid_spec=pltpu.PrefetchScalarGridSpec(
            num_scalar_prefetch=0,
            grid=(N // nb,),
            in_specs=[
                pl.BlockSpec((rb, WC), lambda i: (i, 0)),
                pl.BlockSpec((WC, 3 * WC), lambda i: (0, 0)),
                pl.BlockSpec((rb, 8), lambda i: (0, 0)),
            ],
            out_specs=pl.BlockSpec((rb, WC), lambda i: (i, 0)),
        ),
        compiler_params=pltpu.CompilerParams(
            dimension_semantics=("parallel",),
            vmem_limit_bytes=vmem_limit),
    )(x2, m_all, aux)
    return out2.reshape(N, H, W, C)


def csam_pallas(x_nchw, conv1_w, conv1_b, conv2_w):
    """PyTorch-layout entry point matching CSAM.forward.
    x_nchw: (N,C,H,W); conv1_w: (MID,C,1,1); conv1_b: (MID,); conv2_w: (1,MID,3,3).
    NOTE: in an NHWC pipeline call csam_pallas_nhwc directly — the two
    transposes below are pure layout plumbing and cost more HBM traffic than
    the kernel itself for this memory-light op."""
    w1_cm = conv1_w[:, :, 0, 0].T                       # (C, MID)
    w2_kjm = jnp.transpose(conv2_w[0], (1, 2, 0))       # (3, 3, MID)
    x_nhwc = jnp.transpose(x_nchw, (0, 2, 3, 1))
    out = csam_pallas_nhwc(x_nhwc, w1_cm, conv1_b, w2_kjm)
    return jnp.transpose(out, (0, 3, 1, 2))


def csam_ref(x_nchw, conv1_w, conv1_b, conv2_w):
    """Pure-JAX reference mirroring the PyTorch forward (NCHW)."""
    dn = ('NCHW', 'OIHW', 'NCHW')
    y = jnp.maximum(x_nchw, 0.0)
    y = jax.lax.conv_general_dilated(y, conv1_w, (1, 1), 'VALID',
                                     dimension_numbers=dn)
    y = y + conv1_b[None, :, None, None]
    y = jax.lax.conv_general_dilated(y, conv2_w, (1, 1), 'SAME',
                                     dimension_numbers=dn)
    return x_nchw * jax.nn.sigmoid(y)


if __name__ == "__main__":
    key = jax.random.PRNGKey(0)
    N, C, H, W = 2, 8, 16, 16          # W * C = 128 -> fully lane-dense tiles
    kx, k1, kb, k2 = jax.random.split(key, 4)

    x = jax.random.normal(kx, (N, C, H, W), jnp.float32)
    conv1_w = jax.random.normal(k1, (MID, C, 1, 1), jnp.float32) * 0.2
    # Module inits this bias to 0; a nonzero value exercises the folded-bias /
    # border handling while keeping the same forward semantics.
    conv1_b = jax.random.normal(kb, (MID,), jnp.float32) * 0.1
    conv2_w = jax.random.normal(k2, (1, MID, 3, 3), jnp.float32) * 0.2

    out = jax.block_until_ready(jax.jit(csam_pallas)(x, conv1_w, conv1_b, conv2_w))
    ref = jax.block_until_ready(csam_ref(x, conv1_w, conv1_b, conv2_w))

    assert out.shape == x.shape and out.dtype == x.dtype
    np.testing.assert_allclose(np.asarray(out), np.asarray(ref),
                               rtol=1e-4, atol=1e-4)
    print("KERNEL_OK")
</pallas_src>

<mosaic_0001>
module attributes {stable_mosaic.version = 11 : i64} {
  func.func @_csam_kernel(%arg0: i32, %arg1: memref<16x128xf32, #tpu.memory_space<vmem>>, %arg2: memref<128x384xf32, #tpu.memory_space<vmem>>, %arg3: memref<16x8xf32, #tpu.memory_space<vmem>>, %arg4: memref<16x128xf32, #tpu.memory_space<vmem>>) attributes {dimension_semantics = [#tpu.dimension_semantics<parallel>], iteration_bounds = array<i64: 2>, scalar_prefetch = 0 : i64, scratch_operands = 0 : i64, tpu.core_type = #tpu.core_type<tc>, window_params = [{transform_indices = @transform_0, window_bounds = array<i64: 16, 128>}, {pipeline_mode = #tpu.pipeline_mode<synchronous>, transform_indices = @transform_1, window_bounds = array<i64: 128, 384>}, {pipeline_mode = #tpu.pipeline_mode<synchronous>, transform_indices = @transform_2, window_bounds = array<i64: 16, 8>}, {transform_indices = @transform_3, window_bounds = array<i64: 16, 128>}]} {
    %c0 = arith.constant 0 : index
    %c0_0 = arith.constant 0 : index
    %0 = vector.load %arg1[%c0, %c0_0] : memref<16x128xf32, #tpu.memory_space<vmem>>, vector<16x128xf32>
    %cst = arith.constant 0.000000e+00 : f32
    %1 = vector.broadcast %cst : f32 to vector<16x128xf32>
    %2 = arith.maximumf %0, %1 : vector<16x128xf32>
    %c0_1 = arith.constant 0 : index
    %c0_2 = arith.constant 0 : index
    %3 = vector.load %arg2[%c0_1, %c0_2] : memref<128x384xf32, #tpu.memory_space<vmem>>, vector<128x384xf32>
    %cst_3 = arith.constant dense<0.000000e+00> : vector<16x384xf32>
    %4 = tpu.matmul %2, %3, %cst_3 {dimension_numbers = #tpu.dot_dimension_numbers<[1], [0], [0], [1], [0, 0, 1, 1], [], []>, precision = #tpu.contract_precision<fp32>} : vector<16x128xf32>, vector<128x384xf32>, vector<16x384xf32> -> vector<16x384xf32>
    %5 = vector.extract_strided_slice %4 {offsets = [0, 0], sizes = [16, 128], strides = [1, 1]} : vector<16x384xf32> to vector<16x128xf32>
    %6 = vector.extract_strided_slice %4 {offsets = [0, 128], sizes = [16, 128], strides = [1, 1]} : vector<16x384xf32> to vector<16x128xf32>
    %7 = vector.extract_strided_slice %4 {offsets = [0, 256], sizes = [16, 128], strides = [1, 1]} : vector<16x384xf32> to vector<16x128xf32>
    %c0_4 = arith.constant 0 : index
    %c0_5 = arith.constant 0 : index
    %8 = vector.load %arg3[%c0_4, %c0_5] : memref<16x8xf32, #tpu.memory_space<vmem>>, vector<16x8xf32>
    %9 = vector.extract_strided_slice %8 {offsets = [0, 0], sizes = [16, 1], strides = [1, 1]} : vector<16x8xf32> to vector<16x1xf32>
    %10 = vector.extract_strided_slice %8 {offsets = [0, 1], sizes = [16, 1], strides = [1, 1]} : vector<16x8xf32> to vector<16x1xf32>
    %11 = vector.extract_strided_slice %8 {offsets = [0, 2], sizes = [16, 1], strides = [1, 1]} : vector<16x8xf32> to vector<16x1xf32>
    %12 = vector.extract_strided_slice %8 {offsets = [0, 3], sizes = [16, 1], strides = [1, 1]} : vector<16x8xf32> to vector<16x1xf32>
    %13 = vector.extract_strided_slice %8 {offsets = [0, 4], sizes = [16, 1], strides = [1, 1]} : vector<16x8xf32> to vector<16x1xf32>
    %c1_i32 = arith.constant 1 : i32
    %14 = tpu.dynamic_rotate %5 by %c1_i32 dim 0 : vector<16x128xf32>, i32 -> vector<16x128xf32>
    %15 = vector.broadcast %9 : vector<16x1xf32> to vector<16x128xf32>
    %16 = arith.mulf %15, %14 : vector<16x128xf32>
    %17 = arith.addf %6, %16 : vector<16x128xf32>
    %c15_i32 = arith.constant 15 : i32
    %18 = tpu.dynamic_rotate %7 by %c15_i32 dim 0 : vector<16x128xf32>, i32 -> vector<16x128xf32>
    %19 = vector.broadcast %10 : vector<16x1xf32> to vector<16x128xf32>
    %20 = arith.mulf %19, %18 : vector<16x128xf32>
    %21 = arith.addf %17, %20 : vector<16x128xf32>
    %22 = tpu.iota {dimensions = array<i32: 1>} : vector<1x128xi32>
    %c8_i32 = arith.constant 8 : i32
    %23 = vector.broadcast %c8_i32 : i32 to vector<1x128xi32>
    %24 = arith.cmpi slt, %22, %23 : vector<1x128xi32>
    %25 = arith.extui %24 : vector<1x128xi1> to vector<1x128xi32>
    %26 = arith.sitofp %25 : vector<1x128xi32> to vector<1x128xf32>
    %c120_i32 = arith.constant 120 : i32
    %27 = vector.broadcast %c120_i32 : i32 to vector<1x128xi32>
    %28 = arith.cmpi sge, %22, %27 : vector<1x128xi32>
    %29 = arith.extui %28 : vector<1x128xi1> to vector<1x128xi32>
    %30 = arith.sitofp %29 : vector<1x128xi32> to vector<1x128xf32>
    %31 = vector.broadcast %11 : vector<16x1xf32> to vector<16x128xf32>
    %32 = arith.addf %21, %31 : vector<16x128xf32>
    %33 = vector.broadcast %12 : vector<16x1xf32> to vector<16x128xf32>
    %34 = vector.broadcast %26 : vector<1x128xf32> to vector<16x128xf32>
    %35 = arith.mulf %33, %34 : vector<16x128xf32>
    %36 = arith.addf %32, %35 : vector<16x128xf32>
    %37 = vector.broadcast %13 : vector<16x1xf32> to vector<16x128xf32>
    %38 = vector.broadcast %30 : vector<1x128xf32> to vector<16x128xf32>
    %39 = arith.mulf %37, %38 : vector<16x128xf32>
    %40 = arith.addf %36, %39 : vector<16x128xf32>
    %cst_6 = arith.constant 5.000000e-01 : f32
    %41 = vector.broadcast %cst_6 : f32 to vector<16x128xf32>
    %42 = arith.mulf %41, %40 : vector<16x128xf32>
    %43 = math.tanh %42 : vector<16x128xf32>
    %cst_7 = arith.constant 5.000000e-01 : f32
    %44 = vector.broadcast %cst_7 : f32 to vector<16x128xf32>
    %45 = arith.mulf %44, %43 : vector<16x128xf32>
    %cst_8 = arith.constant 5.000000e-01 : f32
    %46 = vector.broadcast %cst_8 : f32 to vector<16x128xf32>
    %47 = arith.addf %45, %46 : vector<16x128xf32>
    %48 = arith.mulf %0, %47 : vector<16x128xf32>
    %c0_9 = arith.constant 0 : index
    %c0_10 = arith.constant 0 : index
    %49 = vector.load %arg4[%c0_9, %c0_10] : memref<16x128xf32, #tpu.memory_space<vmem>>, vector<16x128xf32>
    tpu.vector_store %arg4[%c0_9, %c0_10], %48 {strides = array<i32>} : memref<16x128xf32, #tpu.memory_space<vmem>>, vector<16x128xf32>,
    return
  }
  func.func @transform_0(%arg0: i32) -> (i32, i32) {
    %c0_i32 = arith.constant 0 : i32
    %c0_i32_0 = arith.constant 0 : i32
    return %arg0, %c0_i32 : i32, i32
  }
  func.func @transform_1(%arg0: i32) -> (i32, i32) {
    %c0_i32 = arith.constant 0 : i32
    %c0_i32_0 = arith.constant 0 : i32
    %c0_i32_1 = arith.constant 0 : i32
    return %c0_i32, %c0_i32_0 : i32, i32
  }
  func.func @transform_2(%arg0: i32) -> (i32, i32) {
    %c0_i32 = arith.constant 0 : i32
    %c0_i32_0 = arith.constant 0 : i32
    %c0_i32_1 = arith.constant 0 : i32
    return %c0_i32, %c0_i32_0 : i32, i32
  }
  func.func @transform_3(%arg0: i32) -> (i32, i32) {
    %c0_i32 = arith.constant 0 : i32
    %c0_i32_0 = arith.constant 0 : i32
    return %arg0, %c0_i32 : i32, i32
  }
}

</mosaic_0001>

<llo_original>
// kernel: csam_pallas.1
$region0: #{csam_pallas.1}
  #allocation0 [shape = 'u32[]', space=smem, size = 0x4, offset = 0x4, fixed_abs, tag = 'smem constant byte address 0x4 - core index']
  #allocation1 [shape = 'u32[144,128]{1,0:T(1,128)}', space=vmem, size = 0x12000, scoped, tag = 'internal scratch']
  %s0 = inlined_call_operand.vmem [shape: f32[32,128], index: 0, kind: input, shape index: {}]
  %s1 = inlined_call_operand.vmem [shape: f32[128,384], index: 1, kind: input, shape index: {}]
  %s2 = inlined_call_operand.vmem [shape: f32[16,8], index: 2, kind: input, shape index: {}]
  %s3 = inlined_call_operand.vmem [shape: f32[32,128], index: 3, kind: output, shape index: {}]
  %s4 = sld [smem:[#allocation0]]
  $region45: #{csam_pallas.1} parent=0
    _
  %s6 = ssub.s32 1, %s4
  %s7 = scalar_select 0, %s6, %s4
  loop: start=0, step=1, limit=4
  $region2: #{csam_pallas.1} parent=0 // loop_pre_header
    _
  $region3: #{csam_pallas.1} parent=0 // loop_header
    %s9 = sphi 0, %s13
    %p10 = scmp.ge.s32.totalorder %s9, 4
    %s19 = sphi 0, %s21
    %s22 = sphi 0, %s19
    %s23 = sphi 0, %s22
    %s39 = sphi 0, %s23
    %s43 = sphi 0, %s43
    %s45 = sphi 0, %s43
    %s46 = sphi 0, %s45
    %s60 = sphi 0, %s46
    %s64 = sphi 0, %s64
    %s66 = sphi 0, %s64
    %s67 = sphi 0, %s66
    %s81 = sphi 0, %s67
    %s87 = sphi 0, %s89
    %s90 = sphi 0, %s87
    %s91 = sphi 0, %s90
    %s107 = sphi 0, %s91
  $region4: #{csam_pallas.1} parent=0 // loop_header_branch
    %12 = sbr.rel (%p10) target = $region8
  $region5: #{csam_pallas.1} parent=0 // loop_body
    %s14 = ssub.s32 %s9, 1
    %s15 = ssub.s32 %s9, 2
    %s16 = sadd.s32 %s9, 1
    %s17 = ssub.s32 %s9, %s16
    %p18 = scmp.eq.s32.totalorder %s17, 0
    %s20 = sadd.s32 %s19, 1
    %s21 = scalar_select %p18, %s19, %s20
    %p24 = pneg %p18
    %p25 = scmp.eq.s32.totalorder %s9, 1
    %p26 = por %p24, %p25
    %p27 = scmp.ne.s32.totalorder %s19, %s22
    %p28 = scmp.eq.s32.totalorder %s9, 0
    %p29 = por %p27, %p28
    %p30 = scmp.ne.s32.totalorder %s19, %s22
    %p31 = scmp.eq.s32.totalorder %s14, 1
    %p32 = por %p30, %p31
    %p33 = scmp.ne.s32.totalorder %s22, %s23
    %p34 = scmp.eq.s32.totalorder %s14, 0
    %p35 = por %p33, %p34
    %p36 = scmp.ne.s32.totalorder %s22, %s23
    %p37 = scmp.eq.s32.totalorder %s15, 1
    %p38 = por %p36, %p37
    %p40 = scmp.ne.s32.totalorder %s23, %s39
    %p41 = scmp.eq.s32.totalorder %s15, 0
    %p42 = por %p40, %p41
    %s44 = sadd.s32 %s43, 1
    %p47 = scmp.eq.s32.totalorder %s9, 1
    %p48 = scmp.ne.s32.totalorder %s43, %s45
    %p49 = scmp.eq.s32.totalorder %s9, 0
    %p50 = por %p48, %p49
    %p51 = scmp.ne.s32.totalorder %s43, %s45
    %p52 = scmp.eq.s32.totalorder %s14, 1
    %p53 = por %p51, %p52
    %p54 = scmp.ne.s32.totalorder %s45, %s46
    %p55 = scmp.eq.s32.totalorder %s14, 0
    %p56 = por %p54, %p55
    %p57 = scmp.ne.s32.totalorder %s45, %s46
    %p58 = scmp.eq.s32.totalorder %s15, 1
    %p59 = por %p57, %p58
    %p61 = scmp.ne.s32.totalorder %s46, %s60
    %p62 = scmp.eq.s32.totalorder %s15, 0
    %p63 = por %p61, %p62
    %s65 = sadd.s32 %s64, 1
    %p68 = scmp.eq.s32.totalorder %s9, 1
    %p69 = scmp.ne.s32.totalorder %s64, %s66
    %p70 = scmp.eq.s32.totalorder %s9, 0
    %p71 = por %p69, %p70
    %p72 = scmp.ne.s32.totalorder %s64, %s66
    %p73 = scmp.eq.s32.totalorder %s14, 1
    %p74 = por %p72, %p73
    %p75 = scmp.ne.s32.totalorder %s66, %s67
    %p76 = scmp.eq.s32.totalorder %s14, 0
    %p77 = por %p75, %p76
    %p78 = scmp.ne.s32.totalorder %s66, %s67
    %p79 = scmp.eq.s32.totalorder %s15, 1
    %p80 = por %p78, %p79
    %p82 = scmp.ne.s32.totalorder %s67, %s81
    %p83 = scmp.eq.s32.totalorder %s15, 0
    %p84 = por %p82, %p83
    %s85 = ssub.s32 %s9, %s16
    %p86 = scmp.eq.s32.totalorder %s85, 0
    %s88 = sadd.s32 %s87, 1
    %s89 = scalar_select %p86, %s87, %s88
    %p92 = pneg %p86
    %p93 = scmp.eq.s32.totalorder %s9, 1
    %p94 = por %p92, %p93
    %p95 = scmp.ne.s32.totalorder %s87, %s90
    %p96 = scmp.eq.s32.totalorder %s9, 0
    %p97 = por %p95, %p96
    %p98 = scmp.ne.s32.totalorder %s87, %s90
    %p99 = scmp.eq.s32.totalorder %s14, 1
    %p100 = por %p98, %p99
    %p101 = scmp.ne.s32.totalorder %s90, %s91
    %p102 = scmp.eq.s32.totalorder %s14, 0
    %p103 = por %p101, %p102
    %p104 = scmp.ne.s32.totalorder %s90, %s91
    %p105 = scmp.eq.s32.totalorder %s15, 1
    %p106 = por %p104, %p105
    %p108 = scmp.ne.s32.totalorder %s91, %s107
    %p109 = scmp.eq.s32.totalorder %s15, 0
    %p110 = por %p108, %p109
    %p111 = scmp.le.s32.totalorder 1, %s9
    %p112 = scmp.lt.s32.totalorder %s9, 3
    %p113 = pnand %p111, %p112
    %p114 = pneg %p113
    // Predicated region
    $region9: #{csam_pallas.1} parent=5 // pred_check
      _
    $region10: #{csam_pallas.1} parent=5 // pred_check_branch
      %116 = sbr.rel (%p113) target = $region12
    $region11: #{csam_pallas.1} parent=5 // pred_region
      %s117 = ssub.s32 %s9, 1
      // Predicated region
      $region13: #{csam_pallas.1} parent=11 // pred_check
        %p118 = pneg %p56
      $region14: #{csam_pallas.1} parent=11 // pred_check_branch
        %120 = sbr.rel (%p118) target = $region16
      $region15: #{csam_pallas.1} parent=11 // pred_region
        _
      $region16: #{csam_pallas.1} parent=11 // pred_fallthru
        _
      // Predicated region
      $region17: #{csam_pallas.1} parent=11 // pred_check
        %p121 = pneg %p77
      $region18: #{csam_pallas.1} parent=11 // pred_check_branch
        %123 = sbr.rel (%p121) target = $region20
      $region19: #{csam_pallas.1} parent=11 // pred_region
        _
      $region20: #{csam_pallas.1} parent=11 // pred_fallthru
        _
    $region12: #{csam_pallas.1} parent=5 // pred_fallthru
      _
    %p124 = scmp.lt.s32.totalorder %s9, 2
    // Predicated region
    $region21: #{csam_pallas.1} parent=5 // pred_check
      %p125 = pneg %p124
    $region22: #{csam_pallas.1} parent=5 // pred_check_branch
      %127 = sbr.rel (%p125) target = $region24
    $region23: #{csam_pallas.1} parent=5 // pred_region
      // Predicated region
      $region25: #{csam_pallas.1} parent=23 // pred_check
        %p128 = pneg %p29
      $region26: #{csam_pallas.1} parent=23 // pred_check_branch
        %130 = sbr.rel (%p128) target = $region28
      $region27: #{csam_pallas.1} parent=23 // pred_region
        %s131 = smul.u32 2, %s9
        %p132 = scmp.lt.s32.totalorder %s131, 3
        %s133 = scalar_select %p132, %s131, 3
        %s134 = smul.addr %s133, 8
        %s135 = scalar_lea.vmem %s0, %s134
        %s136 = smul.u32 2, %s9
      $region28: #{csam_pallas.1} parent=23 // pred_fallthru
        _
    $region24: #{csam_pallas.1} parent=5 // pred_fallthru
      _
    %p137 = scmp.le.s32.totalorder 1, %s9
    %p138 = scmp.lt.s32.totalorder %s9, 3
    %p139 = pnand %p137, %p138
    %p140 = pneg %p139
    // Predicated region
    $region29: #{csam_pallas.1} parent=5 // pred_check
      _
    $region30: #{csam_pallas.1} parent=5 // pred_check_branch
      %142 = sbr.rel (%p139) target = $region32
    $region31: #{csam_pallas.1} parent=5 // pred_region
      %s143 = ssub.s32 %s9, 1
      %s144 = smul.u32 2, %s14
      %p145 = scmp.lt.s32.totalorder %s144, 3
      %s146 = scalar_select %p145, %s144, 3
      %s147 = smul.addr %s146, 8
      %s148 = scalar_lea.vmem %s0, %s147
      %p149 = pneg %p35
      %p150 = pneg %p32
      %p151 = pneg %p56
      %p152 = pneg %p53
      %p153 = pneg %p77
      %p154 = pneg %p74
      %p155 = pneg %p103
      %p156 = pneg %p100
      %s157 = smul.u32 2, %s14
      %p158 = scmp.lt.s32.totalorder %s157, 3
      %s159 = scalar_select %p158, %s157, 3
      %s160 = smul.addr %s159, 8
      %s161 = scalar_lea.vmem %s3, %s160
      %s162 = smul.u32 2, %s14
      %p163 = scmp.lt.s32.totalorder %s162, 3
      %s164 = scalar_select %p163, %s162, 3
      %s165 = smul.addr %s164, 8
      %s166 = scalar_lea.vmem %s0, %s165
      %s167 = smul.u32 2, %s14
      %s168 = smul.u32 2, %s14
      %p169 = scmp.lt.s32.totalorder %s168, 3
      %s170 = scalar_select %p169, %s168, 3
      %s171 = smul.addr %s170, 8
      %s172 = scalar_lea.vmem %s3, %s171
      %s173 = smul.u32 2, %s14
      %v174 = vld [vmem:[%s166] sm:$0xff]
      %v175 = vld [vmem:[%s166 + $0x8] sm:$0xff]
      %v176 = vmax.f32 %v174, 0.0
      %v177 = vmax.f32 %v175, 0.0
      %v178 = vld [vmem:[%s1] sm:$0xff]
      %v179 = vld [vmem:[%s1 + $0x8] sm:$0xff]
      %v180 = vld [vmem:[%s1 + $0x10] sm:$0xff]
      %v181 = vld [vmem:[%s1 + $0x18] sm:$0xff]
      %v182 = vld [vmem:[%s1 + $0x20] sm:$0xff]
      %v183 = vld [vmem:[%s1 + $0x28] sm:$0xff]
      %v184 = vld [vmem:[%s1 + $0x30] sm:$0xff]
      %v185 = vld [vmem:[%s1 + $0x38] sm:$0xff]
      %v186 = vld [vmem:[%s1 + $0x40] sm:$0xff]
      %v187 = vld [vmem:[%s1 + $0x48] sm:$0xff]
      %v188 = vld [vmem:[%s1 + $0x50] sm:$0xff]
      %v189 = vld [vmem:[%s1 + $0x58] sm:$0xff]
      %v190 = vld [vmem:[%s1 + $0x60] sm:$0xff]
      %v191 = vld [vmem:[%s1 + $0x68] sm:$0xff]
      %v192 = vld [vmem:[%s1 + $0x70] sm:$0xff]
      %v193 = vld [vmem:[%s1 + $0x78] sm:$0xff]
      %v194 = vld [vmem:[%s1 + $0x80] sm:$0xff]
      %v195 = vld [vmem:[%s1 + $0x88] sm:$0xff]
      %v196 = vld [vmem:[%s1 + $0x90] sm:$0xff]
      %v197 = vld [vmem:[%s1 + $0x98] sm:$0xff]
      %v198 = vld [vmem:[%s1 + $0xa0] sm:$0xff]
      %v199 = vld [vmem:[%s1 + $0xa8] sm:$0xff]
      %v200 = vld [vmem:[%s1 + $0xb0] sm:$0xff]
      %v201 = vld [vmem:[%s1 + $0xb8] sm:$0xff]
      %v202 = vld [vmem:[%s1 + $0xc0] sm:$0xff]
      %v203 = vld [vmem:[%s1 + $0xc8] sm:$0xff]
      %v204 = vld [vmem:[%s1 + $0xd0] sm:$0xff]
      %v205 = vld [vmem:[%s1 + $0xd8] sm:$0xff]
      %v206 = vld [vmem:[%s1 + $0xe0] sm:$0xff]
      %v207 = vld [vmem:[%s1 + $0xe8] sm:$0xff]
      %v208 = vld [vmem:[%s1 + $0xf0] sm:$0xff]
      %v209 = vld [vmem:[%s1 + $0xf8] sm:$0xff]
      %v210 = vld [vmem:[%s1 + $0x100] sm:$0xff]
      %v211 = vld [vmem:[%s1 + $0x108] sm:$0xff]
      %v212 = vld [vmem:[%s1 + $0x110] sm:$0xff]
      %v213 = vld [vmem:[%s1 + $0x118] sm:$0xff]
      %v214 = vld [vmem:[%s1 + $0x120] sm:$0xff]
      %v215 = vld [vmem:[%s1 + $0x128] sm:$0xff]
      %v216 = vld [vmem:[%s1 + $0x130] sm:$0xff]
      %v217 = vld [vmem:[%s1 + $0x138] sm:$0xff]
      %v218 = vld [vmem:[%s1 + $0x140] sm:$0xff]
      %v219 = vld [vmem:[%s1 + $0x148] sm:$0xff]
      %v220 = vld [vmem:[%s1 + $0x150] sm:$0xff]
      %v221 = vld [vmem:[%s1 + $0x158] sm:$0xff]
      %v222 = vld [vmem:[%s1 + $0x160] sm:$0xff]
      %v223 = vld [vmem:[%s1 + $0x168] sm:$0xff]
      %v224 = vld [vmem:[%s1 + $0x170] sm:$0xff]
      %v225 = vld [vmem:[%s1 + $0x178] sm:$0xff]
      %v226 = vand.u32 %v224, 4294901760
      %227 = vmatprep.subr.mxu0 %v226
      %v228 = vand.u32 %v223, 4294901760
      %229 = vmatpush1.msra.mxu0 %v228
      %v230 = vand.u32 %v221, 4294901760
      %231 = vmatprep.subr.mxu0 %v230
      %v232 = vand.u32 %v220, 4294901760
      %233 = vmatpush1.msra.mxu0 %v232
      %v234 = vand.u32 %v218, 4294901760
      %235 = vmatprep.subr.mxu0 %v234
      %v236 = vand.u32 %v217, 4294901760
      %237 = vmatpush1.msra.mxu0 %v236
      %v238 = vand.u32 %v215, 4294901760
      %239 = vmatprep.subr.mxu0 %v238
      %v240 = vand.u32 %v214, 4294901760
      %241 = vmatpush1.msra.mxu0 %v240
      %v242 = vand.u32 %v212, 4294901760
      %243 = vmatprep.subr.mxu0 %v242
      %v244 = vand.u32 %v211, 4294901760
      %245 = vmatpush1.msra.mxu0 %v244
      %v246 = vand.u32 %v209, 4294901760
      %247 = vmatprep.subr.mxu0 %v246
      %v248 = vand.u32 %v208, 4294901760
      %249 = vmatpush1.msra.mxu0 %v248
      %v250 = vand.u32 %v206, 4294901760
      %251 = vmatprep.subr.mxu0 %v250
      %v252 = vand.u32 %v205, 4294901760
      %253 = vmatpush1.msra.mxu0 %v252
      %v254 = vand.u32 %v203, 4294901760
      %255 = vmatprep.subr.mxu0 %v254
      %v256 = vand.u32 %v202, 4294901760
      %257 = vmatpush1.msra.mxu0 %v256
      %v258 = vand.u32 %v200, 4294901760
      %259 = vmatprep.subr.mxu0 %v258
      %v260 = vand.u32 %v199, 4294901760
      %261 = vmatpush1.msra.mxu0 %v260
      %v262 = vand.u32 %v197, 4294901760
      %263 = vmatprep.subr.mxu0 %v262
      %v264 = vand.u32 %v196, 4294901760
      %265 = vmatpush1.msra.mxu0 %v264
      %v266 = vand.u32 %v194, 4294901760
      %267 = vmatprep.subr.mxu0 %v266
      %v268 = vand.u32 %v193, 4294901760
      %269 = vmatpush1.msra.mxu0 %v268
      %v270 = vand.u32 %v191, 4294901760
      %271 = vmatprep.subr.mxu0 %v270
      %v272 = vand.u32 %v190, 4294901760
      %273 = vmatpush1.msra.mxu0 %v272
      %v274 = vand.u32 %v188, 4294901760
      %275 = vmatprep.subr.mxu0 %v274
      %v276 = vand.u32 %v187, 4294901760
      %277 = vmatpush1.msra.mxu0 %v276
      %v278 = vand.u32 %v185, 4294901760
      %279 = vmatprep.subr.mxu0 %v278
      %v280 = vand.u32 %v184, 4294901760
      %281 = vmatpush1.msra.mxu0 %v280
      %v282 = vand.u32 %v182, 4294901760
      %283 = vmatprep.subr.mxu0 %v282
      %v284 = vand.u32 %v181, 4294901760
      %285 = vmatpush1.msra.mxu0 %v284
      %v286 = vand.u32 %v179, 4294901760
      %287 = vmatprep.subr.mxu0 %v286
      %v288 = vand.u32 %v178, 4294901760
      %289 = vmatpush1.msra.mxu0 %v288
      %290 = vmatprep.subr.mxu0 0.0
      %291 = vmatpush2.msra.mxu0 0.0
      %292 = vmatprep.subr.mxu0 0.0
      %293 = vmatpush2.msra.mxu0 0.0
      %294 = vmatprep.subr.mxu0 0.0
      %295 = vmatpush2.msra.mxu0 0.0
      %296 = vmatprep.subr.mxu0 0.0
      %297 = vmatpush2.msra.mxu0 0.0
      %298 = vmatprep.subr.mxu0 0.0
      %299 = vmatpush2.msra.mxu0 0.0
      %300 = vmatprep.subr.mxu0 0.0
      %301 = vmatpush2.msra.mxu0 0.0
      %302 = vmatprep.subr.mxu0 0.0
      %303 = vmatpush2.msra.mxu0 0.0
      %304 = vmatprep.subr.mxu0 0.0
      %305 = vmatpush2.msra.mxu0 0.0
      %306 = vmatprep.subr.mxu0 0.0
      %307 = vmatpush2.msra.mxu0 0.0
      %308 = vmatprep.subr.mxu0 0.0
      %309 = vmatpush2.msra.mxu0 0.0
      %310 = vmatprep.subr.mxu0 0.0
      %311 = vmatpush2.msra.mxu0 0.0
      %312 = vmatprep.subr.mxu0 0.0
      %313 = vmatpush2.msra.mxu0 0.0
      %314 = vmatprep.subr.mxu0 0.0
      %315 = vmatpush2.msra.mxu0 0.0
      %316 = vmatprep.subr.mxu0 0.0
      %317 = vmatpush2.msra.mxu0 0.0
      %318 = vmatprep.subr.mxu0 0.0
      %319 = vmatpush2.msra.mxu0 0.0
      %320 = vmatprep.subr.mxu0 0.0
      %321 = vmatpush2.msra.mxu0 0.0
      %322 = vmatprep.mubr.f32.mxu0 0.0
      %v323 = vand.u32 %v176, 4294901760
      %v324 = vsub.f32 %v176, %v323
      %v325 = vand.u32 %v324, 4294901760
      %v326 = vsub.f32 %v324, %v325
      %v327 = vand.u32 %v326, 4294901760
      %328 = vmatmul.mubr.f32.gmra.mxu0 %v327
      %v329 = vpop.f32.mrf.mxu0
      %v330 = vadd.f32 0.0, %v329
      %v331 = vpop.f32.mrf.mxu0
      %v332 = vadd.f32 0.0, %v331
      %333 = vmatprep.mubr.f32.mxu0 0.0
      %v334 = vand.u32 %v177, 4294901760
      %v335 = vsub.f32 %v177, %v334
      %v336 = vand.u32 %v335, 4294901760
      %v337 = vsub.f32 %v335, %v336
      %v338 = vand.u32 %v337, 4294901760
      %339 = vmatmul.mubr.f32.gmra.mxu0 %v338
      %v340 = vpop.f32.mrf.mxu0
      %v341 = vadd.f32 0.0, %v340
      %v342 = vpop.f32.mrf.mxu0
      %v343 = vadd.f32 0.0, %v342
      %344 = vdwg.mxu0
      %v345 = vand.u32 %v224, 4294901760
      %v346 = vsub.f32 %v224, %v345
      %v347 = vand.u32 %v346, 4294901760
      %v348 = vsub.f32 %v346, %v347
      %v349 = vand.u32 %v348, 4294901760
      %350 = vmatprep.subr.mxu0 %v349
      %v351 = vand.u32 %v223, 4294901760
      %v352 = vsub.f32 %v223, %v351
      %v353 = vand.u32 %v352, 4294901760
      %v354 = vsub.f32 %v352, %v353
      %v355 = vand.u32 %v354, 4294901760
      %356 = vmatpush1.msra.mxu0 %v355
      %v357 = vand.u32 %v221, 4294901760
      %v358 = vsub.f32 %v221, %v357
      %v359 = vand.u32 %v358, 4294901760
      %v360 = vsub.f32 %v358, %v359
      %v361 = vand.u32 %v360, 4294901760
      %362 = vmatprep.subr.mxu0 %v361
      %v363 = vand.u32 %v220, 4294901760
      %v364 = vsub.f32 %v220, %v363
      %v365 = vand.u32 %v364, 4294901760
      %v366 = vsub.f32 %v364, %v365
      %v367 = vand.u32 %v366, 4294901760
      %368 = vmatpush1.msra.mxu0 %v367
      %v369 = vand.u32 %v218, 4294901760
      %v370 = vsub.f32 %v218, %v369
      %v371 = vand.u32 %v370, 4294901760
      %v372 = vsub.f32 %v370, %v371
      %v373 = vand.u32 %v372, 4294901760
      %374 = vmatprep.subr.mxu0 %v373
      %v375 = vand.u32 %v217, 4294901760
      %v376 = vsub.f32 %v217, %v375
      %v377 = vand.u32 %v376, 4294901760
      %v378 = vsub.f32 %v376, %v377
      %v379 = vand.u32 %v378, 4294901760
      %380 = vmatpush1.msra.mxu0 %v379
      %v381 = vand.u32 %v215, 4294901760
      %v382 = vsub.f32 %v215, %v381
      %v383 = vand.u32 %v382, 4294901760
      %v384 = vsub.f32 %v382, %v383
      %v385 = vand.u32 %v384, 4294901760
      %386 = vmatprep.subr.mxu0 %v385
      %v387 = vand.u32 %v214, 4294901760
      %v388 = vsub.f32 %v214, %v387
      %v389 = vand.u32 %v388, 4294901760
      %v390 = vsub.f32 %v388, %v389
      %v391 = vand.u32 %v390, 4294901760
      %392 = vmatpush1.msra.mxu0 %v391
      %v393 = vand.u32 %v212, 4294901760
      %v394 = vsub.f32 %v212, %v393
      %v395 = vand.u32 %v394, 4294901760
      %v396 = vsub.f32 %v394, %v395
      %v397 = vand.u32 %v396, 4294901760
      %398 = vmatprep.subr.mxu0 %v397
      %v399 = vand.u32 %v211, 4294901760
      %v400 = vsub.f32 %v211, %v399
      %v401 = vand.u32 %v400, 4294901760
      %v402 = vsub.f32 %v400, %v401
      %v403 = vand.u32 %v402, 4294901760
      %404 = vmatpush1.msra.mxu0 %v403
      %v405 = vand.u32 %v209, 4294901760
      %v406 = vsub.f32 %v209, %v405
      %v407 = vand.u32 %v406, 4294901760
      %v408 = vsub.f32 %v406, %v407
      %v409 = vand.u32 %v408, 4294901760
      %410 = vmatprep.subr.mxu0 %v409
      %v411 = vand.u32 %v208, 4294901760
      %v412 = vsub.f32 %v208, %v411
      %v413 = vand.u32 %v412, 4294901760
      %v414 = vsub.f32 %v412, %v413
      %v415 = vand.u32 %v414, 4294901760
      %416 = vmatpush1.msra.mxu0 %v415
      %v417 = vand.u32 %v206, 4294901760
      %v418 = vsub.f32 %v206, %v417
      %v419 = vand.u32 %v418, 4294901760
      %v420 = vsub.f32 %v418, %v419
      %v421 = vand.u32 %v420, 4294901760
      %422 = vmatprep.subr.mxu0 %v421
      %v423 = vand.u32 %v205, 4294901760
      %v424 = vsub.f32 %v205, %v423
      %v425 = vand.u32 %v424, 4294901760
      %v426 = vsub.f32 %v424, %v425
      %v427 = vand.u32 %v426, 4294901760
      %428 = vmatpush1.msra.mxu0 %v427
      %v429 = vand.u32 %v203, 4294901760
      %v430 = vsub.f32 %v203, %v429
      %v431 = vand.u32 %v430, 4294901760
      %v432 = vsub.f32 %v430, %v431
      %v433 = vand.u32 %v432, 4294901760
      %434 = vmatprep.subr.mxu0 %v433
      %v435 = vand.u32 %v202, 4294901760
      %v436 = vsub.f32 %v202, %v435
      %v437 = vand.u32 %v436, 4294901760
      %v438 = vsub.f32 %v436, %v437
      %v439 = vand.u32 %v438, 4294901760
      %440 = vmatpush1.msra.mxu0 %v439
      %v441 = vand.u32 %v200, 4294901760
      %v442 = vsub.f32 %v200, %v441
      %v443 = vand.u32 %v442, 4294901760
      %v444 = vsub.f32 %v442, %v443
      %v445 = vand.u32 %v444, 4294901760
      %446 = vmatprep.subr.mxu0 %v445
      %v447 = vand.u32 %v199, 4294901760
      %v448 = vsub.f32 %v199, %v447
      %v449 = vand.u32 %v448, 4294901760
      %v450 = vsub.f32 %v448, %v449
      %v451 = vand.u32 %v450, 4294901760
      %452 = vmatpush1.msra.mxu0 %v451
      %v453 = vand.u32 %v197, 4294901760
      %v454 = vsub.f32 %v197, %v453
      %v455 = vand.u32 %v454, 4294901760
      %v456 = vsub.f32 %v454, %v455
      %v457 = vand.u32 %v456, 4294901760
      %458 = vmatprep.subr.mxu0 %v457
      %v459 = vand.u32 %v196, 4294901760
      %v460 = vsub.f32 %v196, %v459
      %v461 = vand.u32 %v460, 4294901760
      %v462 = vsub.f32 %v460, %v461
      %v463 = vand.u32 %v462, 4294901760
      %464 = vmatpush1.msra.mxu0 %v463
      %v465 = vand.u32 %v194, 4294901760
      %v466 = vsub.f32 %v194, %v465
      %v467 = vand.u32 %v466, 4294901760
      %v468 = vsub.f32 %v466, %v467
      %v469 = vand.u32 %v468, 4294901760
      %470 = vmatprep.subr.mxu0 %v469
      %v471 = vand.u32 %v193, 4294901760
      %v472 = vsub.f32 %v193, %v471
      %v473 = vand.u32 %v472, 4294901760
      %v474 = vsub.f32 %v472, %v473
      %v475 = vand.u32 %v474, 4294901760
      %476 = vmatpush1.msra.mxu0 %v475
      %v477 = vand.u32 %v191, 4294901760
      %v478 = vsub.f32 %v191, %v477
      %v479 = vand.u32 %v478, 4294901760
      %v480 = vsub.f32 %v478, %v479
      %v481 = vand.u32 %v480, 4294901760
      %482 = vmatprep.subr.mxu0 %v481
      %v483 = vand.u32 %v190, 4294901760
      %v484 = vsub.f32 %v190, %v483
      %v485 = vand.u32 %v484, 4294901760
      %v486 = vsub.f32 %v484, %v485
      %v487 = vand.u32 %v486, 4294901760
      %488 = vmatpush1.msra.mxu0 %v487
      %v489 = vand.u32 %v188, 4294901760
      %v490 = vsub.f32 %v188, %v489
      %v491 = vand.u32 %v490, 4294901760
      %v492 = vsub.f32 %v490, %v491
      %v493 = vand.u32 %v492, 4294901760
      %494 = vmatprep.subr.mxu0 %v493
      %v495 = vand.u32 %v187, 4294901760
      %v496 = vsub.f32 %v187, %v495
      %v497 = vand.u32 %v496, 4294901760
      %v498 = vsub.f32 %v496, %v497
      %v499 = vand.u32 %v498, 4294901760
      %500 = vmatpush1.msra.mxu0 %v499
      %v501 = vand.u32 %v185, 4294901760
      %v502 = vsub.f32 %v185, %v501
      %v503 = vand.u32 %v502, 4294901760
      %v504 = vsub.f32 %v502, %v503
      %v505 = vand.u32 %v504, 4294901760
      %506 = vmatprep.subr.mxu0 %v505
      %v507 = vand.u32 %v184, 4294901760
      %v508 = vsub.f32 %v184, %v507
      %v509 = vand.u32 %v508, 4294901760
      %v510 = vsub.f32 %v508, %v509
      %v511 = vand.u32 %v510, 4294901760
      %512 = vmatpush1.msra.mxu0 %v511
      %v513 = vand.u32 %v182, 4294901760
      %v514 = vsub.f32 %v182, %v513
      %v515 = vand.u32 %v514, 4294901760
      %v516 = vsub.f32 %v514, %v515
      %v517 = vand.u32 %v516, 4294901760
      %518 = vmatprep.subr.mxu0 %v517
      %v519 = vand.u32 %v181, 4294901760
      %v520 = vsub.f32 %v181, %v519
      %v521 = vand.u32 %v520, 4294901760
      %v522 = vsub.f32 %v520, %v521
      %v523 = vand.u32 %v522, 4294901760
      %524 = vmatpush1.msra.mxu0 %v523
      %v525 = vand.u32 %v179, 4294901760
      %v526 = vsub.f32 %v179, %v525
      %v527 = vand.u32 %v526, 4294901760
      %v528 = vsub.f32 %v526, %v527
      %v529 = vand.u32 %v528, 4294901760
      %530 = vmatprep.subr.mxu0 %v529
      %v531 = vand.u32 %v178, 4294901760
      %v532 = vsub.f32 %v178, %v531
      %v533 = vand.u32 %v532, 4294901760
      %v534 = vsub.f32 %v532, %v533
      %v535 = vand.u32 %v534, 4294901760
      %536 = vmatpush1.msra.mxu0 %v535
      %537 = vmatprep.subr.mxu0 0.0
      %538 = vmatpush2.msra.mxu0 0.0
      %539 = vmatprep.subr.mxu0 0.0
      %540 = vmatpush2.msra.mxu0 0.0
      %541 = vmatprep.subr.mxu0 0.0
      %542 = vmatpush2.msra.mxu0 0.0
      %543 = vmatprep.subr.mxu0 0.0
      %544 = vmatpush2.msra.mxu0 0.0
      %545 = vmatprep.subr.mxu0 0.0
      %546 = vmatpush2.msra.mxu0 0.0
      %547 = vmatprep.subr.mxu0 0.0
      %548 = vmatpush2.msra.mxu0 0.0
      %549 = vmatprep.subr.mxu0 0.0
      %550 = vmatpush2.msra.mxu0 0.0
      %551 = vmatprep.subr.mxu0 0.0
      %552 = vmatpush2.msra.mxu0 0.0
      %553 = vmatprep.subr.mxu0 0.0
      %554 = vmatpush2.msra.mxu0 0.0
      %555 = vmatprep.subr.mxu0 0.0
      %556 = vmatpush2.msra.mxu0 0.0
      %557 = vmatprep.subr.mxu0 0.0
      %558 = vmatpush2.msra.mxu0 0.0
      %559 = vmatprep.subr.mxu0 0.0
      %560 = vmatpush2.msra.mxu0 0.0
      %561 = vmatprep.subr.mxu0 0.0
      %562 = vmatpush2.msra.mxu0 0.0
      %563 = vmatprep.subr.mxu0 0.0
      %564 = vmatpush2.msra.mxu0 0.0
      %565 = vmatprep.subr.mxu0 0.0
      %566 = vmatpush2.msra.mxu0 0.0
      %567 = vmatprep.subr.mxu0 0.0
      %568 = vmatpush2.msra.mxu0 0.0
      %569 = vmatprep.mubr.f32.mxu0 0.0
      %v570 = vand.u32 %v176, 4294901760
      %571 = vmatmul.mubr.f32.gmra.mxu0 %v570
      %v572 = vpop.f32.mrf.mxu0
      %v573 = vadd.f32 %v330, %v572
      %v574 = vpop.f32.mrf.mxu0
      %v575 = vadd.f32 %v332, %v574
      %576 = vmatprep.mubr.f32.mxu0 0.0
      %v577 = vand.u32 %v177, 4294901760
      %578 = vmatmul.mubr.f32.gmra.mxu0 %v577
      %v579 = vpop.f32.mrf.mxu0
      %v580 = vadd.f32 %v341, %v579
      %v581 = vpop.f32.mrf.mxu0
      %v582 = vadd.f32 %v343, %v581
      %583 = vdwg.mxu0
      %v584 = vand.u32 %v224, 4294901760
      %v585 = vsub.f32 %v224, %v584
      %586 = vmatprep.subr.mxu0 %v585
      %v587 = vand.u32 %v223, 4294901760
      %v588 = vsub.f32 %v223, %v587
      %589 = vmatpush1.msra.mxu0 %v588
      %v590 = vand.u32 %v221, 4294901760
      %v591 = vsub.f32 %v221, %v590
      %592 = vmatprep.subr.mxu0 %v591
      %v593 = vand.u32 %v220, 4294901760
      %v594 = vsub.f32 %v220, %v593
      %595 = vmatpush1.msra.mxu0 %v594
      %v596 = vand.u32 %v218, 4294901760
      %v597 = vsub.f32 %v218, %v596
      %598 = vmatprep.subr.mxu0 %v597
      %v599 = vand.u32 %v217, 4294901760
      %v600 = vsub.f32 %v217, %v599
      %601 = vmatpush1.msra.mxu0 %v600
      %v602 = vand.u32 %v215, 4294901760
      %v603 = vsub.f32 %v215, %v602
      %604 = vmatprep.subr.mxu0 %v603
      %v605 = vand.u32 %v214, 4294901760
      %v606 = vsub.f32 %v214, %v605
      %607 = vmatpush1.msra.mxu0 %v606
      %v608 = vand.u32 %v212, 4294901760
      %v609 = vsub.f32 %v212, %v608
      %610 = vmatprep.subr.mxu0 %v609
      %v611 = vand.u32 %v211, 4294901760
      %v612 = vsub.f32 %v211, %v611
      %613 = vmatpush1.msra.mxu0 %v612
      %v614 = vand.u32 %v209, 4294901760
      %v615 = vsub.f32 %v209, %v614
      %616 = vmatprep.subr.mxu0 %v615
      %v617 = vand.u32 %v208, 4294901760
      %v618 = vsub.f32 %v208, %v617
      %619 = vmatpush1.msra.mxu0 %v618
      %v620 = vand.u32 %v206, 4294901760
      %v621 = vsub.f32 %v206, %v620
      %622 = vmatprep.subr.mxu0 %v621
      %v623 = vand.u32 %v205, 4294901760
      %v624 = vsub.f32 %v205, %v623
      %625 = vmatpush1.msra.mxu0 %v624
      %v626 = vand.u32 %v203, 4294901760
      %v627 = vsub.f32 %v203, %v626
      %628 = vmatprep.subr.mxu0 %v627
      %v629 = vand.u32 %v202, 4294901760
      %v630 = vsub.f32 %v202, %v629
      %631 = vmatpush1.msra.mxu0 %v630
      %v632 = vand.u32 %v200, 4294901760
      %v633 = vsub.f32 %v200, %v632
      %634 = vmatprep.subr.mxu0 %v633
      %v635 = vand.u32 %v199, 4294901760
      %v636 = vsub.f32 %v199, %v635
      %637 = vmatpush1.msra.mxu0 %v636
      %v638 = vand.u32 %v197, 4294901760
      %v639 = vsub.f32 %v197, %v638
      %640 = vmatprep.subr.mxu0 %v639
      %v641 = vand.u32 %v196, 4294901760
      %v642 = vsub.f32 %v196, %v641
      %643 = vmatpush1.msra.mxu0 %v642
      %v644 = vand.u32 %v194, 4294901760
      %v645 = vsub.f32 %v194, %v644
      %646 = vmatprep.subr.mxu0 %v645
      %v647 = vand.u32 %v193, 4294901760
      %v648 = vsub.f32 %v193, %v647
      %649 = vmatpush1.msra.mxu0 %v648
      %v650 = vand.u32 %v191, 4294901760
      %v651 = vsub.f32 %v191, %v650
      %652 = vmatprep.subr.mxu0 %v651
      %v653 = vand.u32 %v190, 4294901760
      %v654 = vsub.f32 %v190, %v653
      %655 = vmatpush1.msra.mxu0 %v654
      %v656 = vand.u32 %v188, 4294901760
      %v657 = vsub.f32 %v188, %v656
      %658 = vmatprep.subr.mxu0 %v657
      %v659 = vand.u32 %v187, 4294901760
      %v660 = vsub.f32 %v187, %v659
      %661 = vmatpush1.msra.mxu0 %v660
      %v662 = vand.u32 %v185, 4294901760
      %v663 = vsub.f32 %v185, %v662
      %664 = vmatprep.subr.mxu0 %v663
      %v665 = vand.u32 %v184, 4294901760
      %v666 = vsub.f32 %v184, %v665
      %667 = vmatpush1.msra.mxu0 %v666
      %v668 = vand.u32 %v182, 4294901760
      %v669 = vsub.f32 %v182, %v668
      %670 = vmatprep.subr.mxu0 %v669
      %v671 = vand.u32 %v181, 4294901760
      %v672 = vsub.f32 %v181, %v671
      %673 = vmatpush1.msra.mxu0 %v672
      %v674 = vand.u32 %v179, 4294901760
      %v675 = vsub.f32 %v179, %v674
      %676 = vmatprep.subr.mxu0 %v675
      %v677 = vand.u32 %v178, 4294901760
      %v678 = vsub.f32 %v178, %v677
      %679 = vmatpush1.msra.mxu0 %v678
      %680 = vmatprep.subr.mxu0 0.0
      %681 = vmatpush2.msra.mxu0 0.0
      %682 = vmatprep.subr.mxu0 0.0
      %683 = vmatpush2.msra.mxu0 0.0
      %684 = vmatprep.subr.mxu0 0.0
      %685 = vmatpush2.msra.mxu0 0.0
      %686 = vmatprep.subr.mxu0 0.0
      %687 = vmatpush2.msra.mxu0 0.0
      %688 = vmatprep.subr.mxu0 0.0
      %689 = vmatpush2.msra.mxu0 0.0
      %690 = vmatprep.subr.mxu0 0.0
      %691 = vmatpush2.msra.mxu0 0.0
      %692 = vmatprep.subr.mxu0 0.0
      %693 = vmatpush2.msra.mxu0 0.0
      %694 = vmatprep.subr.mxu0 0.0
      %695 = vmatpush2.msra.mxu0 0.0
      %696 = vmatprep.subr.mxu0 0.0
      %697 = vmatpush2.msra.mxu0 0.0
      %698 = vmatprep.subr.mxu0 0.0
      %699 = vmatpush2.msra.mxu0 0.0
      %700 = vmatprep.subr.mxu0 0.0
      %701 = vmatpush2.msra.mxu0 0.0
      %702 = vmatprep.subr.mxu0 0.0
      %703 = vmatpush2.msra.mxu0 0.0
      %704 = vmatprep.subr.mxu0 0.0
      %705 = vmatpush2.msra.mxu0 0.0
      %706 = vmatprep.subr.mxu0 0.0
      %707 = vmatpush2.msra.mxu0 0.0
      %708 = vmatprep.subr.mxu0 0.0
      %709 = vmatpush2.msra.mxu0 0.0
      %710 = vmatprep.subr.mxu0 0.0
      %711 = vmatpush2.msra.mxu0 0.0
      %712 = vmatprep.mubr.f32.mxu0 0.0
      %v713 = vand.u32 %v176, 4294901760
      %v714 = vsub.f32 %v176, %v713
      %715 = vmatmul.mubr.f32.gmra.mxu0 %v714
      %v716 = vpop.f32.mrf.mxu0
      %v717 = vadd.f32 %v573, %v716
      %v718 = vpop.f32.mrf.mxu0
      %v719 = vadd.f32 %v575, %v718
      %720 = vmatprep.mubr.f32.mxu0 0.0
      %v721 = vand.u32 %v177, 4294901760
      %v722 = vsub.f32 %v177, %v721
      %723 = vmatmul.mubr.f32.gmra.mxu0 %v722
      %v724 = vpop.f32.mrf.mxu0
      %v725 = vadd.f32 %v580, %v724
      %v726 = vpop.f32.mrf.mxu0
      %v727 = vadd.f32 %v582, %v726
      %728 = vdwg.mxu0
      %v729 = vand.u32 %v224, 4294901760
      %730 = vmatprep.subr.mxu0 %v729
      %v731 = vand.u32 %v223, 4294901760
      %732 = vmatpush1.msra.mxu0 %v731
      %v733 = vand.u32 %v221, 4294901760
      %734 = vmatprep.subr.mxu0 %v733
      %v735 = vand.u32 %v220, 4294901760
      %736 = vmatpush1.msra.mxu0 %v735
      %v737 = vand.u32 %v218, 4294901760
      %738 = vmatprep.subr.mxu0 %v737
      %v739 = vand.u32 %v217, 4294901760
      %740 = vmatpush1.msra.mxu0 %v739
      %v741 = vand.u32 %v215, 4294901760
      %742 = vmatprep.subr.mxu0 %v741
      %v743 = vand.u32 %v214, 4294901760
      %744 = vmatpush1.msra.mxu0 %v743
      %v745 = vand.u32 %v212, 4294901760
      %746 = vmatprep.subr.mxu0 %v745
      %v747 = vand.u32 %v211, 4294901760
      %748 = vmatpush1.msra.mxu0 %v747
      %v749 = vand.u32 %v209, 4294901760
      %750 = vmatprep.subr.mxu0 %v749
      %v751 = vand.u32 %v208, 4294901760
      %752 = vmatpush1.msra.mxu0 %v751
      %v753 = vand.u32 %v206, 4294901760
      %754 = vmatprep.subr.mxu0 %v753
      %v755 = vand.u32 %v205, 4294901760
      %756 = vmatpush1.msra.mxu0 %v755
      %v757 = vand.u32 %v203, 4294901760
      %758 = vmatprep.subr.mxu0 %v757
      %v759 = vand.u32 %v202, 4294901760
      %760 = vmatpush1.msra.mxu0 %v759
      %v761 = vand.u32 %v200, 4294901760
      %762 = vmatprep.subr.mxu0 %v761
      %v763 = vand.u32 %v199, 4294901760
      %764 = vmatpush1.msra.mxu0 %v763
      %v765 = vand.u32 %v197, 4294901760
      %766 = vmatprep.subr.mxu0 %v765
      %v767 = vand.u32 %v196, 4294901760
      %768 = vmatpush1.msra.mxu0 %v767
      %v769 = vand.u32 %v194, 4294901760
      %770 = vmatprep.subr.mxu0 %v769
      %v771 = vand.u32 %v193, 4294901760
      %772 = vmatpush1.msra.mxu0 %v771
      %v773 = vand.u32 %v191, 4294901760
      %774 = vmatprep.subr.mxu0 %v773
      %v775 = vand.u32 %v190, 4294901760
      %776 = vmatpush1.msra.mxu0 %v775
      %v777 = vand.u32 %v188, 4294901760
      %778 = vmatprep.subr.mxu0 %v777
      %v779 = vand.u32 %v187, 4294901760
      %780 = vmatpush1.msra.mxu0 %v779
      %v781 = vand.u32 %v185, 4294901760
      %782 = vmatprep.subr.mxu0 %v781
      %v783 = vand.u32 %v184, 4294901760
      %784 = vmatpush1.msra.mxu0 %v783
      %v785 = vand.u32 %v182, 4294901760
      %786 = vmatprep.subr.mxu0 %v785
      %v787 = vand.u32 %v181, 4294901760
      %788 = vmatpush1.msra.mxu0 %v787
      %v789 = vand.u32 %v179, 4294901760
      %790 = vmatprep.subr.mxu0 %v789
      %v791 = vand.u32 %v178, 4294901760
      %792 = vmatpush1.msra.mxu0 %v791
      %793 = vmatprep.subr.mxu0 0.0
      %794 = vmatpush2.msra.mxu0 0.0
      %795 = vmatprep.subr.mxu0 0.0
      %796 = vmatpush2.msra.mxu0 0.0
      %797 = vmatprep.subr.mxu0 0.0
      %798 = vmatpush2.msra.mxu0 0.0
      %799 = vmatprep.subr.mxu0 0.0
      %800 = vmatpush2.msra.mxu0 0.0
      %801 = vmatprep.subr.mxu0 0.0
      %802 = vmatpush2.msra.mxu0 0.0
      %803 = vmatprep.subr.mxu0 0.0
      %804 = vmatpush2.msra.mxu0 0.0
      %805 = vmatprep.subr.mxu0 0.0
      %806 = vmatpush2.msra.mxu0 0.0
      %807 = vmatprep.subr.mxu0 0.0
      %808 = vmatpush2.msra.mxu0 0.0
      %809 = vmatprep.subr.mxu0 0.0
      %810 = vmatpush2.msra.mxu0 0.0
      %811 = vmatprep.subr.mxu0 0.0
      %812 = vmatpush2.msra.mxu0 0.0
      %813 = vmatprep.subr.mxu0 0.0
      %814 = vmatpush2.msra.mxu0 0.0
      %815 = vmatprep.subr.mxu0 0.0
      %816 = vmatpush2.msra.mxu0 0.0
      %817 = vmatprep.subr.mxu0 0.0
      %818 = vmatpush2.msra.mxu0 0.0
      %819 = vmatprep.subr.mxu0 0.0
      %820 = vmatpush2.msra.mxu0 0.0
      %821 = vmatprep.subr.mxu0 0.0
      %822 = vmatpush2.msra.mxu0 0.0
      %823 = vmatprep.subr.mxu0 0.0
      %824 = vmatpush2.msra.mxu0 0.0
      %825 = vmatprep.mubr.f32.mxu0 0.0
      %v826 = vand.u32 %v176, 4294901760
      %v827 = vsub.f32 %v176, %v826
      %v828 = vand.u32 %v827, 4294901760
      %829 = vmatmul.mubr.f32.gmra.mxu0 %v828
      %v830 = vpop.f32.mrf.mxu0
      %v831 = vadd.f32 %v717, %v830
      %v832 = vpop.f32.mrf.mxu0
      %v833 = vadd.f32 %v719, %v832
      %834 = vmatprep.mubr.f32.mxu0 0.0
      %v835 = vand.u32 %v177, 4294901760
      %v836 = vsub.f32 %v177, %v835
      %v837 = vand.u32 %v836, 4294901760
      %838 = vmatmul.mubr.f32.gmra.mxu0 %v837
      %v839 = vpop.f32.mrf.mxu0
      %v840 = vadd.f32 %v725, %v839
      %v841 = vpop.f32.mrf.mxu0
      %v842 = vadd.f32 %v727, %v841
      %843 = vdwg.mxu0
      %v844 = vand.u32 %v224, 4294901760
      %v845 = vsub.f32 %v224, %v844
      %v846 = vand.u32 %v845, 4294901760
      %847 = vmatprep.subr.mxu0 %v846
      %v848 = vand.u32 %v223, 4294901760
      %v849 = vsub.f32 %v223, %v848
      %v850 = vand.u32 %v849, 4294901760
      %851 = vmatpush1.msra.mxu0 %v850
      %v852 = vand.u32 %v221, 4294901760
      %v853 = vsub.f32 %v221, %v852
      %v854 = vand.u32 %v853, 4294901760
      %855 = vmatprep.subr.mxu0 %v854
      %v856 = vand.u32 %v220, 4294901760
      %v857 = vsub.f32 %v220, %v856
      %v858 = vand.u32 %v857, 4294901760
      %859 = vmatpush1.msra.mxu0 %v858
      %v860 = vand.u32 %v218, 4294901760
      %v861 = vsub.f32 %v218, %v860
      %v862 = vand.u32 %v861, 4294901760
      %863 = vmatprep.subr.mxu0 %v862
      %v864 = vand.u32 %v217, 4294901760
      %v865 = vsub.f32 %v217, %v864
      %v866 = vand.u32 %v865, 4294901760
      %867 = vmatpush1.msra.mxu0 %v866
      %v868 = vand.u32 %v215, 4294901760
      %v869 = vsub.f32 %v215, %v868
      %v870 = vand.u32 %v869, 4294901760
      %871 = vmatprep.subr.mxu0 %v870
      %v872 = vand.u32 %v214, 4294901760
      %v873 = vsub.f32 %v214, %v872
      %v874 = vand.u32 %v873, 4294901760
      %875 = vmatpush1.msra.mxu0 %v874
      %v876 = vand.u32 %v212, 4294901760
      %v877 = vsub.f32 %v212, %v876
      %v878 = vand.u32 %v877, 4294901760
      %879 = vmatprep.subr.mxu0 %v878
      %v880 = vand.u32 %v211, 4294901760
      %v881 = vsub.f32 %v211, %v880
      %v882 = vand.u32 %v881, 4294901760
      %883 = vmatpush1.msra.mxu0 %v882
      %v884 = vand.u32 %v209, 4294901760
      %v885 = vsub.f32 %v209, %v884
      %v886 = vand.u32 %v885, 4294901760
      %887 = vmatprep.subr.mxu0 %v886
      %v888 = vand.u32 %v208, 4294901760
      %v889 = vsub.f32 %v208, %v888
      %v890 = vand.u32 %v889, 4294901760
      %891 = vmatpush1.msra.mxu0 %v890
      %v892 = vand.u32 %v206, 4294901760
      %v893 = vsub.f32 %v206, %v892
      %v894 = vand.u32 %v893, 4294901760
      %895 = vmatprep.subr.mxu0 %v894
      %v896 = vand.u32 %v205, 4294901760
      %v897 = vsub.f32 %v205, %v896
      %v898 = vand.u32 %v897, 4294901760
      %899 = vmatpush1.msra.mxu0 %v898
      %v900 = vand.u32 %v203, 4294901760
      %v901 = vsub.f32 %v203, %v900
      %v902 = vand.u32 %v901, 4294901760
      %903 = vmatprep.subr.mxu0 %v902
      %v904 = vand.u32 %v202, 4294901760
      %v905 = vsub.f32 %v202, %v904
      %v906 = vand.u32 %v905, 4294901760
      %907 = vmatpush1.msra.mxu0 %v906
      %v908 = vand.u32 %v200, 4294901760
      %v909 = vsub.f32 %v200, %v908
      %v910 = vand.u32 %v909, 4294901760
      %911 = vmatprep.subr.mxu0 %v910
      %v912 = vand.u32 %v199, 4294901760
      %v913 = vsub.f32 %v199, %v912
      %v914 = vand.u32 %v913, 4294901760
      %915 = vmatpush1.msra.mxu0 %v914
      %v916 = vand.u32 %v197, 4294901760
      %v917 = vsub.f32 %v197, %v916
      %v918 = vand.u32 %v917, 4294901760
      %919 = vmatprep.subr.mxu0 %v918
      %v920 = vand.u32 %v196, 4294901760
      %v921 = vsub.f32 %v196, %v920
      %v922 = vand.u32 %v921, 4294901760
      %923 = vmatpush1.msra.mxu0 %v922
      %v924 = vand.u32 %v194, 4294901760
      %v925 = vsub.f32 %v194, %v924
      %v926 = vand.u32 %v925, 4294901760
      %927 = vmatprep.subr.mxu0 %v926
      %v928 = vand.u32 %v193, 4294901760
      %v929 = vsub.f32 %v193, %v928
      %v930 = vand.u32 %v929, 4294901760
      %931 = vmatpush1.msra.mxu0 %v930
      %v932 = vand.u32 %v191, 4294901760
      %v933 = vsub.f32 %v191, %v932
      %v934 = vand.u32 %v933, 4294901760
      %935 = vmatprep.subr.mxu0 %v934
      %v936 = vand.u32 %v190, 4294901760
      %v937 = vsub.f32 %v190, %v936
      %v938 = vand.u32 %v937, 4294901760
      %939 = vmatpush1.msra.mxu0 %v938
      %v940 = vand.u32 %v188, 4294901760
      %v941 = vsub.f32 %v188, %v940
      %v942 = vand.u32 %v941, 4294901760
      %943 = vmatprep.subr.mxu0 %v942
      %v944 = vand.u32 %v187, 4294901760
      %v945 = vsub.f32 %v187, %v944
      %v946 = vand.u32 %v945, 4294901760
      %947 = vmatpush1.msra.mxu0 %v946
      %v948 = vand.u32 %v185, 4294901760
      %v949 = vsub.f32 %v185, %v948
      %v950 = vand.u32 %v949, 4294901760
      %951 = vmatprep.subr.mxu0 %v950
      %v952 = vand.u32 %v184, 4294901760
      %v953 = vsub.f32 %v184, %v952
      %v954 = vand.u32 %v953, 4294901760
      %955 = vmatpush1.msra.mxu0 %v954
      %v956 = vand.u32 %v182, 4294901760
      %v957 = vsub.f32 %v182, %v956
      %v958 = vand.u32 %v957, 4294901760
      %959 = vmatprep.subr.mxu0 %v958
      %v960 = vand.u32 %v181, 4294901760
      %v961 = vsub.f32 %v181, %v960
      %v962 = vand.u32 %v961, 4294901760
      %963 = vmatpush1.msra.mxu0 %v962
      %v964 = vand.u32 %v179, 4294901760
      %v965 = vsub.f32 %v179, %v964
      %v966 = vand.u32 %v965, 4294901760
      %967 = vmatprep.subr.mxu0 %v966
      %v968 = vand.u32 %v178, 4294901760
      %v969 = vsub.f32 %v178, %v968
      %v970 = vand.u32 %v969, 4294901760
      %971 = vmatpush1.msra.mxu0 %v970
      %972 = vmatprep.subr.mxu0 0.0
      %973 = vmatpush2.msra.mxu0 0.0
      %974 = vmatprep.subr.mxu0 0.0
      %975 = vmatpush2.msra.mxu0 0.0
      %976 = vmatprep.subr.mxu0 0.0
      %977 = vmatpush2.msra.mxu0 0.0
      %978 = vmatprep.subr.mxu0 0.0
      %979 = vmatpush2.msra.mxu0 0.0
      %980 = vmatprep.subr.mxu0 0.0
      %981 = vmatpush2.msra.mxu0 0.0
      %982 = vmatprep.subr.mxu0 0.0
      %983 = vmatpush2.msra.mxu0 0.0
      %984 = vmatprep.subr.mxu0 0.0
      %985 = vmatpush2.msra.mxu0 0.0
      %986 = vmatprep.subr.mxu0 0.0
      %987 = vmatpush2.msra.mxu0 0.0
      %988 = vmatprep.subr.mxu0 0.0
      %989 = vmatpush2.msra.mxu0 0.0
      %990 = vmatprep.subr.mxu0 0.0
      %991 = vmatpush2.msra.mxu0 0.0
      %992 = vmatprep.subr.mxu0 0.0
      %993 = vmatpush2.msra.mxu0 0.0
      %994 = vmatprep.subr.mxu0 0.0
      %995 = vmatpush2.msra.mxu0 0.0
      %996 = vmatprep.subr.mxu0 0.0
      %997 = vmatpush2.msra.mxu0 0.0
      %998 = vmatprep.subr.mxu0 0.0
      %999 = vmatpush2.msra.mxu0 0.0
      %1000 = vmatprep.subr.mxu0 0.0
      %1001 = vmatpush2.msra.mxu0 0.0
      %1002 = vmatprep.subr.mxu0 0.0
      %1003 = vmatpush2.msra.mxu0 0.0
      %1004 = vmatprep.mubr.f32.mxu0 0.0
      %v1005 = vand.u32 %v176, 4294901760
      %1006 = vmatmul.mubr.f32.gmra.mxu0 %v1005
      %v1007 = vpop.f32.mrf.mxu0
      %v1008 = vadd.f32 %v831, %v1007
      %v1009 = vpop.f32.mrf.mxu0
      %v1010 = vadd.f32 %v833, %v1009
      %1011 = vmatprep.mubr.f32.mxu0 0.0
      %v1012 = vand.u32 %v177, 4294901760
      %1013 = vmatmul.mubr.f32.gmra.mxu0 %v1012
      %v1014 = vpop.f32.mrf.mxu0
      %v1015 = vadd.f32 %v840, %v1014
      %v1016 = vpop.f32.mrf.mxu0
      %v1017 = vadd.f32 %v842, %v1016
      %1018 = vdwg.mxu0
      %v1019 = vand.u32 %v224, 4294901760
      %1020 = vmatprep.subr.mxu0 %v1019
      %v1021 = vand.u32 %v223, 4294901760
      %1022 = vmatpush1.msra.mxu0 %v1021
      %v1023 = vand.u32 %v221, 4294901760
      %1024 = vmatprep.subr.mxu0 %v1023
      %v1025 = vand.u32 %v220, 4294901760
      %1026 = vmatpush1.msra.mxu0 %v1025
      %v1027 = vand.u32 %v218, 4294901760
      %1028 = vmatprep.subr.mxu0 %v1027
      %v1029 = vand.u32 %v217, 4294901760
      %1030 = vmatpush1.msra.mxu0 %v1029
      %v1031 = vand.u32 %v215, 4294901760
      %1032 = vmatprep.subr.mxu0 %v1031
      %v1033 = vand.u32 %v214, 4294901760
      %1034 = vmatpush1.msra.mxu0 %v1033
      %v1035 = vand.u32 %v212, 4294901760
      %1036 = vmatprep.subr.mxu0 %v1035
      %v1037 = vand.u32 %v211, 4294901760
      %1038 = vmatpush1.msra.mxu0 %v1037
      %v1039 = vand.u32 %v209, 4294901760
      %1040 = vmatprep.subr.mxu0 %v1039
      %v1041 = vand.u32 %v208, 4294901760
      %1042 = vmatpush1.msra.mxu0 %v1041
      %v1043 = vand.u32 %v206, 4294901760
      %1044 = vmatprep.subr.mxu0 %v1043
      %v1045 = vand.u32 %v205, 4294901760
      %1046 = vmatpush1.msra.mxu0 %v1045
      %v1047 = vand.u32 %v203, 4294901760
      %1048 = vmatprep.subr.mxu0 %v1047
      %v1049 = vand.u32 %v202, 4294901760
      %1050 = vmatpush1.msra.mxu0 %v1049
      %v1051 = vand.u32 %v200, 4294901760
      %1052 = vmatprep.subr.mxu0 %v1051
      %v1053 = vand.u32 %v199, 4294901760
      %1054 = vmatpush1.msra.mxu0 %v1053
      %v1055 = vand.u32 %v197, 4294901760
      %1056 = vmatprep.subr.mxu0 %v1055
      %v1057 = vand.u32 %v196, 4294901760
      %1058 = vmatpush1.msra.mxu0 %v1057
      %v1059 = vand.u32 %v194, 4294901760
      %1060 = vmatprep.subr.mxu0 %v1059
      %v1061 = vand.u32 %v193, 4294901760
      %1062 = vmatpush1.msra.mxu0 %v1061
      %v1063 = vand.u32 %v191, 4294901760
      %1064 = vmatprep.subr.mxu0 %v1063
      %v1065 = vand.u32 %v190, 4294901760
      %1066 = vmatpush1.msra.mxu0 %v1065
      %v1067 = vand.u32 %v188, 4294901760
      %1068 = vmatprep.subr.mxu0 %v1067
      %v1069 = vand.u32 %v187, 4294901760
      %1070 = vmatpush1.msra.mxu0 %v1069
      %v1071 = vand.u32 %v185, 4294901760
      %1072 = vmatprep.subr.mxu0 %v1071
      %v1073 = vand.u32 %v184, 4294901760
      %1074 = vmatpush1.msra.mxu0 %v1073
      %v1075 = vand.u32 %v182, 4294901760
      %1076 = vmatprep.subr.mxu0 %v1075
      %v1077 = vand.u32 %v181, 4294901760
      %1078 = vmatpush1.msra.mxu0 %v1077
      %v1079 = vand.u32 %v179, 4294901760
      %1080 = vmatprep.subr.mxu0 %v1079
      %v1081 = vand.u32 %v178, 4294901760
      %1082 = vmatpush1.msra.mxu0 %v1081
      %1083 = vmatprep.subr.mxu0 0.0
      %1084 = vmatpush2.msra.mxu0 0.0
      %1085 = vmatprep.subr.mxu0 0.0
      %1086 = vmatpush2.msra.mxu0 0.0
      %1087 = vmatprep.subr.mxu0 0.0
      %1088 = vmatpush2.msra.mxu0 0.0
      %1089 = vmatprep.subr.mxu0 0.0
      %1090 = vmatpush2.msra.mxu0 0.0
      %1091 = vmatprep.subr.mxu0 0.0
      %1092 = vmatpush2.msra.mxu0 0.0
      %1093 = vmatprep.subr.mxu0 0.0
      %1094 = vmatpush2.msra.mxu0 0.0
      %1095 = vmatprep.subr.mxu0 0.0
      %1096 = vmatpush2.msra.mxu0 0.0
      %1097 = vmatprep.subr.mxu0 0.0
      %1098 = vmatpush2.msra.mxu0 0.0
      %1099 = vmatprep.subr.mxu0 0.0
      %1100 = vmatpush2.msra.mxu0 0.0
      %1101 = vmatprep.subr.mxu0 0.0
      %1102 = vmatpush2.msra.mxu0 0.0
      %1103 = vmatprep.subr.mxu0 0.0
      %1104 = vmatpush2.msra.mxu0 0.0
      %1105 = vmatprep.subr.mxu0 0.0
      %1106 = vmatpush2.msra.mxu0 0.0
      %1107 = vmatprep.subr.mxu0 0.0
      %1108 = vmatpush2.msra.mxu0 0.0
      %1109 = vmatprep.subr.mxu0 0.0
      %1110 = vmatpush2.msra.mxu0 0.0
      %1111 = vmatprep.subr.mxu0 0.0
      %1112 = vmatpush2.msra.mxu0 0.0
      %1113 = vmatprep.subr.mxu0 0.0
      %1114 = vmatpush2.msra.mxu0 0.0
      %1115 = vmatprep.mubr.f32.mxu0 0.0
      %v1116 = vand.u32 %v176, 4294901760
      %1117 = vmatmul.mubr.f32.gmra.mxu0 %v1116
      %v1118 = vpop.f32.mrf.mxu0
      %v1119 = vadd.f32 %v1008, %v1118
      %v1120 = vpop.f32.mrf.mxu0
      %v1121 = vadd.f32 %v1010, %v1120
      %1122 = vmatprep.mubr.f32.mxu0 0.0
      %v1123 = vand.u32 %v177, 4294901760
      %1124 = vmatmul.mubr.f32.gmra.mxu0 %v1123
      %v1125 = vpop.f32.mrf.mxu0
      %v1126 = vadd.f32 %v1015, %v1125
      %v1127 = vpop.f32.mrf.mxu0
      %v1128 = vadd.f32 %v1017, %v1127
      %1129 = vdwg.mxu0
      %1130 = vmatprep.subr.mxu0 0.0
      %v1131 = vand.u32 %v225, 4294901760
      %1132 = vmatpush1.msra.mxu0 %v1131
      %1133 = vmatprep.subr.mxu0 0.0
      %v1134 = vand.u32 %v222, 4294901760
      %1135 = vmatpush1.msra.mxu0 %v1134
      %1136 = vmatprep.subr.mxu0 0.0
      %v1137 = vand.u32 %v219, 4294901760
      %1138 = vmatpush1.msra.mxu0 %v1137
      %1139 = vmatprep.subr.mxu0 0.0
      %v1140 = vand.u32 %v216, 4294901760
      %1141 = vmatpush1.msra.mxu0 %v1140
      %1142 = vmatprep.subr.mxu0 0.0
      %v1143 = vand.u32 %v213, 4294901760
      %1144 = vmatpush1.msra.mxu0 %v1143
      %1145 = vmatprep.subr.mxu0 0.0
      %v1146 = vand.u32 %v210, 4294901760
      %1147 = vmatpush1.msra.mxu0 %v1146
      %1148 = vmatprep.subr.mxu0 0.0
      %v1149 = vand.u32 %v207, 4294901760
      %1150 = vmatpush1.msra.mxu0 %v1149
      %1151 = vmatprep.subr.mxu0 0.0
      %v1152 = vand.u32 %v204, 4294901760
      %1153 = vmatpush1.msra.mxu0 %v1152
      %1154 = vmatprep.subr.mxu0 0.0
      %v1155 = vand.u32 %v201, 4294901760
      %1156 = vmatpush1.msra.mxu0 %v1155
      %1157 = vmatprep.subr.mxu0 0.0
      %v1158 = vand.u32 %v198, 4294901760
      %1159 = vmatpush1.msra.mxu0 %v1158
      %1160 = vmatprep.subr.mxu0 0.0
      %v1161 = vand.u32 %v195, 4294901760
      %1162 = vmatpush1.msra.mxu0 %v1161
      %1163 = vmatprep.subr.mxu0 0.0
      %v1164 = vand.u32 %v192, 4294901760
      %1165 = vmatpush1.msra.mxu0 %v1164
      %1166 = vmatprep.subr.mxu0 0.0
      %v1167 = vand.u32 %v189, 4294901760
      %1168 = vmatpush1.msra.mxu0 %v1167
      %1169 = vmatprep.subr.mxu0 0.0
      %v1170 = vand.u32 %v186, 4294901760
      %1171 = vmatpush1.msra.mxu0 %v1170
      %1172 = vmatprep.subr.mxu0 0.0
      %v1173 = vand.u32 %v183, 4294901760
      %1174 = vmatpush1.msra.mxu0 %v1173
      %1175 = vmatprep.subr.mxu0 0.0
      %v1176 = vand.u32 %v180, 4294901760
      %1177 = vmatpush1.msra.mxu0 %v1176
      %1178 = vmatprep.subr.mxu0 0.0
      %1179 = vmatpush2.msra.mxu0 0.0
      %1180 = vmatprep.subr.mxu0 0.0
      %1181 = vmatpush2.msra.mxu0 0.0
      %1182 = vmatprep.subr.mxu0 0.0
      %1183 = vmatpush2.msra.mxu0 0.0
      %1184 = vmatprep.subr.mxu0 0.0
      %1185 = vmatpush2.msra.mxu0 0.0
      %1186 = vmatprep.subr.mxu0 0.0
      %1187 = vmatpush2.msra.mxu0 0.0
      %1188 = vmatprep.subr.mxu0 0.0
      %1189 = vmatpush2.msra.mxu0 0.0
      %1190 = vmatprep.subr.mxu0 0.0
      %1191 = vmatpush2.msra.mxu0 0.0
      %1192 = vmatprep.subr.mxu0 0.0
      %1193 = vmatpush2.msra.mxu0 0.0
      %1194 = vmatprep.subr.mxu0 0.0
      %1195 = vmatpush2.msra.mxu0 0.0
      %1196 = vmatprep.subr.mxu0 0.0
      %1197 = vmatpush2.msra.mxu0 0.0
      %1198 = vmatprep.subr.mxu0 0.0
      %1199 = vmatpush2.msra.mxu0 0.0
      %1200 = vmatprep.subr.mxu0 0.0
      %1201 = vmatpush2.msra.mxu0 0.0
      %1202 = vmatprep.subr.mxu0 0.0
      %1203 = vmatpush2.msra.mxu0 0.0
      %1204 = vmatprep.subr.mxu0 0.0
      %1205 = vmatpush2.msra.mxu0 0.0
      %1206 = vmatprep.subr.mxu0 0.0
      %1207 = vmatpush2.msra.mxu0 0.0
      %1208 = vmatprep.subr.mxu0 0.0
      %1209 = vmatpush2.msra.mxu0 0.0
      %1210 = vmatprep.mubr.f32.mxu0 0.0
      %v1211 = vand.u32 %v176, 4294901760
      %v1212 = vsub.f32 %v176, %v1211
      %v1213 = vand.u32 %v1212, 4294901760
      %v1214 = vsub.f32 %v1212, %v1213
      %v1215 = vand.u32 %v1214, 4294901760
      %1216 = vmatmul.mubr.f32.gmra.mxu0 %v1215
      %v1217 = vpop.f32.mrf.mxu0
      %v1218 = vadd.f32 0.0, %v1217
      %v1219 = vpop.f32.mrf.mxu0
      %1220 = vmatprep.mubr.f32.mxu0 0.0
      %v1221 = vand.u32 %v177, 4294901760
      %v1222 = vsub.f32 %v177, %v1221
      %v1223 = vand.u32 %v1222, 4294901760
      %v1224 = vsub.f32 %v1222, %v1223
      %v1225 = vand.u32 %v1224, 4294901760
      %1226 = vmatmul.mubr.f32.gmra.mxu0 %v1225
      %v1227 = vpop.f32.mrf.mxu0
      %v1228 = vadd.f32 0.0, %v1227
      %v1229 = vpop.f32.mrf.mxu0
      %1230 = vdwg.mxu0
      %1231 = vmatprep.subr.mxu0 0.0
      %v1232 = vand.u32 %v225, 4294901760
      %v1233 = vsub.f32 %v225, %v1232
      %v1234 = vand.u32 %v1233, 4294901760
      %v1235 = vsub.f32 %v1233, %v1234
      %v1236 = vand.u32 %v1235, 4294901760
      %1237 = vmatpush1.msra.mxu0 %v1236
      %1238 = vmatprep.subr.mxu0 0.0
      %v1239 = vand.u32 %v222, 4294901760
      %v1240 = vsub.f32 %v222, %v1239
      %v1241 = vand.u32 %v1240, 4294901760
      %v1242 = vsub.f32 %v1240, %v1241
      %v1243 = vand.u32 %v1242, 4294901760
      %1244 = vmatpush1.msra.mxu0 %v1243
      %1245 = vmatprep.subr.mxu0 0.0
      %v1246 = vand.u32 %v219, 4294901760
      %v1247 = vsub.f32 %v219, %v1246
      %v1248 = vand.u32 %v1247, 4294901760
      %v1249 = vsub.f32 %v1247, %v1248
      %v1250 = vand.u32 %v1249, 4294901760
      %1251 = vmatpush1.msra.mxu0 %v1250
      %1252 = vmatprep.subr.mxu0 0.0
      %v1253 = vand.u32 %v216, 4294901760
      %v1254 = vsub.f32 %v216, %v1253
      %v1255 = vand.u32 %v1254, 4294901760
      %v1256 = vsub.f32 %v1254, %v1255
      %v1257 = vand.u32 %v1256, 4294901760
      %1258 = vmatpush1.msra.mxu0 %v1257
      %1259 = vmatprep.subr.mxu0 0.0
      %v1260 = vand.u32 %v213, 4294901760
      %v1261 = vsub.f32 %v213, %v1260
      %v1262 = vand.u32 %v1261, 4294901760
      %v1263 = vsub.f32 %v1261, %v1262
      %v1264 = vand.u32 %v1263, 4294901760
      %1265 = vmatpush1.msra.mxu0 %v1264
      %1266 = vmatprep.subr.mxu0 0.0
      %v1267 = vand.u32 %v210, 4294901760
      %v1268 = vsub.f32 %v210, %v1267
      %v1269 = vand.u32 %v1268, 4294901760
      %v1270 = vsub.f32 %v1268, %v1269
      %v1271 = vand.u32 %v1270, 4294901760
      %1272 = vmatpush1.msra.mxu0 %v1271
      %1273 = vmatprep.subr.mxu0 0.0
      %v1274 = vand.u32 %v207, 4294901760
      %v1275 = vsub.f32 %v207, %v1274
      %v1276 = vand.u32 %v1275, 4294901760
      %v1277 = vsub.f32 %v1275, %v1276
      %v1278 = vand.u32 %v1277, 4294901760
      %1279 = vmatpush1.msra.mxu0 %v1278
      %1280 = vmatprep.subr.mxu0 0.0
      %v1281 = vand.u32 %v204, 4294901760
      %v1282 = vsub.f32 %v204, %v1281
      %v1283 = vand.u32 %v1282, 4294901760
      %v1284 = vsub.f32 %v1282, %v1283
      %v1285 = vand.u32 %v1284, 4294901760
      %1286 = vmatpush1.msra.mxu0 %v1285
      %1287 = vmatprep.subr.mxu0 0.0
      %v1288 = vand.u32 %v201, 4294901760
      %v1289 = vsub.f32 %v201, %v1288
      %v1290 = vand.u32 %v1289, 4294901760
      %v1291 = vsub.f32 %v1289, %v1290
      %v1292 = vand.u32 %v1291, 4294901760
      %1293 = vmatpush1.msra.mxu0 %v1292
      %1294 = vmatprep.subr.mxu0 0.0
      %v1295 = vand.u32 %v198, 4294901760
      %v1296 = vsub.f32 %v198, %v1295
      %v1297 = vand.u32 %v1296, 4294901760
      %v1298 = vsub.f32 %v1296, %v1297
      %v1299 = vand.u32 %v1298, 4294901760
      %1300 = vmatpush1.msra.mxu0 %v1299
      %1301 = vmatprep.subr.mxu0 0.0
      %v1302 = vand.u32 %v195, 4294901760
      %v1303 = vsub.f32 %v195, %v1302
      %v1304 = vand.u32 %v1303, 4294901760
      %v1305 = vsub.f32 %v1303, %v1304
      %v1306 = vand.u32 %v1305, 4294901760
      %1307 = vmatpush1.msra.mxu0 %v1306
      %1308 = vmatprep.subr.mxu0 0.0
      %v1309 = vand.u32 %v192, 4294901760
      %v1310 = vsub.f32 %v192, %v1309
      %v1311 = vand.u32 %v1310, 4294901760
      %v1312 = vsub.f32 %v1310, %v1311
      %v1313 = vand.u32 %v1312, 4294901760
      %1314 = vmatpush1.msra.mxu0 %v1313
      %1315 = vmatprep.subr.mxu0 0.0
      %v1316 = vand.u32 %v189, 4294901760
      %v1317 = vsub.f32 %v189, %v1316
      %v1318 = vand.u32 %v1317, 4294901760
      %v1319 = vsub.f32 %v1317, %v1318
      %v1320 = vand.u32 %v1319, 4294901760
      %1321 = vmatpush1.msra.mxu0 %v1320
      %1322 = vmatprep.subr.mxu0 0.0
      %v1323 = vand.u32 %v186, 4294901760
      %v1324 = vsub.f32 %v186, %v1323
      %v1325 = vand.u32 %v1324, 4294901760
      %v1326 = vsub.f32 %v1324, %v1325
      %v1327 = vand.u32 %v1326, 4294901760
      %1328 = vmatpush1.msra.mxu0 %v1327
      %1329 = vmatprep.subr.mxu0 0.0
      %v1330 = vand.u32 %v183, 4294901760
      %v1331 = vsub.f32 %v183, %v1330
      %v1332 = vand.u32 %v1331, 4294901760
      %v1333 = vsub.f32 %v1331, %v1332
      %v1334 = vand.u32 %v1333, 4294901760
      %1335 = vmatpush1.msra.mxu0 %v1334
      %1336 = vmatprep.subr.mxu0 0.0
      %v1337 = vand.u32 %v180, 4294901760
      %v1338 = vsub.f32 %v180, %v1337
      %v1339 = vand.u32 %v1338, 4294901760
      %v1340 = vsub.f32 %v1338, %v1339
      %v1341 = vand.u32 %v1340, 4294901760
      %1342 = vmatpush1.msra.mxu0 %v1341
      %1343 = vmatprep.subr.mxu0 0.0
      %1344 = vmatpush2.msra.mxu0 0.0
      %1345 = vmatprep.subr.mxu0 0.0
      %1346 = vmatpush2.msra.mxu0 0.0
      %1347 = vmatprep.subr.mxu0 0.0
      %1348 = vmatpush2.msra.mxu0 0.0
      %1349 = vmatprep.subr.mxu0 0.0
      %1350 = vmatpush2.msra.mxu0 0.0
      %1351 = vmatprep.subr.mxu0 0.0
      %1352 = vmatpush2.msra.mxu0 0.0
      %1353 = vmatprep.subr.mxu0 0.0
      %1354 = vmatpush2.msra.mxu0 0.0
      %1355 = vmatprep.subr.mxu0 0.0
      %1356 = vmatpush2.msra.mxu0 0.0
      %1357 = vmatprep.subr.mxu0 0.0
      %1358 = vmatpush2.msra.mxu0 0.0
      %1359 = vmatprep.subr.mxu0 0.0
      %1360 = vmatpush2.msra.mxu0 0.0
      %1361 = vmatprep.subr.mxu0 0.0
      %1362 = vmatpush2.msra.mxu0 0.0
      %1363 = vmatprep.subr.mxu0 0.0
      %1364 = vmatpush2.msra.mxu0 0.0
      %1365 = vmatprep.subr.mxu0 0.0
      %1366 = vmatpush2.msra.mxu0 0.0
      %1367 = vmatprep.subr.mxu0 0.0
      %1368 = vmatpush2.msra.mxu0 0.0
      %1369 = vmatprep.subr.mxu0 0.0
      %1370 = vmatpush2.msra.mxu0 0.0
      %1371 = vmatprep.subr.mxu0 0.0
      %1372 = vmatpush2.msra.mxu0 0.0
      %1373 = vmatprep.subr.mxu0 0.0
      %1374 = vmatpush2.msra.mxu0 0.0
      %1375 = vmatprep.mubr.f32.mxu0 0.0
      %v1376 = vand.u32 %v176, 4294901760
      %1377 = vmatmul.mubr.f32.gmra.mxu0 %v1376
      %v1378 = vpop.f32.mrf.mxu0
      %v1379 = vadd.f32 %v1218, %v1378
      %v1380 = vpop.f32.mrf.mxu0
      %1381 = vmatprep.mubr.f32.mxu0 0.0
      %v1382 = vand.u32 %v177, 4294901760
      %1383 = vmatmul.mubr.f32.gmra.mxu0 %v1382
      %v1384 = vpop.f32.mrf.mxu0
      %v1385 = vadd.f32 %v1228, %v1384
      %v1386 = vpop.f32.mrf.mxu0
      %1387 = vdwg.mxu0
      %1388 = vmatprep.subr.mxu0 0.0
      %v1389 = vand.u32 %v225, 4294901760
      %v1390 = vsub.f32 %v225, %v1389
      %1391 = vmatpush1.msra.mxu0 %v1390
      %1392 = vmatprep.subr.mxu0 0.0
      %v1393 = vand.u32 %v222, 4294901760
      %v1394 = vsub.f32 %v222, %v1393
      %1395 = vmatpush1.msra.mxu0 %v1394
      %1396 = vmatprep.subr.mxu0 0.0
      %v1397 = vand.u32 %v219, 4294901760
      %v1398 = vsub.f32 %v219, %v1397
      %1399 = vmatpush1.msra.mxu0 %v1398
      %1400 = vmatprep.subr.mxu0 0.0
      %v1401 = vand.u32 %v216, 4294901760
      %v1402 = vsub.f32 %v216, %v1401
      %1403 = vmatpush1.msra.mxu0 %v1402
      %1404 = vmatprep.subr.mxu0 0.0
      %v1405 = vand.u32 %v213, 4294901760
      %v1406 = vsub.f32 %v213, %v1405
      %1407 = vmatpush1.msra.mxu0 %v1406
      %1408 = vmatprep.subr.mxu0 0.0
      %v1409 = vand.u32 %v210, 4294901760
      %v1410 = vsub.f32 %v210, %v1409
      %1411 = vmatpush1.msra.mxu0 %v1410
      %1412 = vmatprep.subr.mxu0 0.0
      %v1413 = vand.u32 %v207, 4294901760
      %v1414 = vsub.f32 %v207, %v1413
      %1415 = vmatpush1.msra.mxu0 %v1414
      %1416 = vmatprep.subr.mxu0 0.0
      %v1417 = vand.u32 %v204, 4294901760
      %v1418 = vsub.f32 %v204, %v1417
      %1419 = vmatpush1.msra.mxu0 %v1418
      %1420 = vmatprep.subr.mxu0 0.0
      %v1421 = vand.u32 %v201, 4294901760
      %v1422 = vsub.f32 %v201, %v1421
      %1423 = vmatpush1.msra.mxu0 %v1422
      %1424 = vmatprep.subr.mxu0 0.0
      %v1425 = vand.u32 %v198, 4294901760
      %v1426 = vsub.f32 %v198, %v1425
      %1427 = vmatpush1.msra.mxu0 %v1426
      %1428 = vmatprep.subr.mxu0 0.0
      %v1429 = vand.u32 %v195, 4294901760
      %v1430 = vsub.f32 %v195, %v1429
      %1431 = vmatpush1.msra.mxu0 %v1430
      %1432 = vmatprep.subr.mxu0 0.0
      %v1433 = vand.u32 %v192, 4294901760
      %v1434 = vsub.f32 %v192, %v1433
      %1435 = vmatpush1.msra.mxu0 %v1434
      %1436 = vmatprep.subr.mxu0 0.0
      %v1437 = vand.u32 %v189, 4294901760
      %v1438 = vsub.f32 %v189, %v1437
      %1439 = vmatpush1.msra.mxu0 %v1438
      %1440 = vmatprep.subr.mxu0 0.0
      %v1441 = vand.u32 %v186, 4294901760
      %v1442 = vsub.f32 %v186, %v1441
      %1443 = vmatpush1.msra.mxu0 %v1442
      %1444 = vmatprep.subr.mxu0 0.0
      %v1445 = vand.u32 %v183, 4294901760
      %v1446 = vsub.f32 %v183, %v1445
      %1447 = vmatpush1.msra.mxu0 %v1446
      %1448 = vmatprep.subr.mxu0 0.0
      %v1449 = vand.u32 %v180, 4294901760
      %v1450 = vsub.f32 %v180, %v1449
      %1451 = vmatpush1.msra.mxu0 %v1450
      %1452 = vmatprep.subr.mxu0 0.0
      %1453 = vmatpush2.msra.mxu0 0.0
      %1454 = vmatprep.subr.mxu0 0.0
      %1455 = vmatpush2.msra.mxu0 0.0
      %1456 = vmatprep.subr.mxu0 0.0
      %1457 = vmatpush2.msra.mxu0 0.0
      %1458 = vmatprep.subr.mxu0 0.0
      %1459 = vmatpush2.msra.mxu0 0.0
      %1460 = vmatprep.subr.mxu0 0.0
      %1461 = vmatpush2.msra.mxu0 0.0
      %1462 = vmatprep.subr.mxu0 0.0
      %1463 = vmatpush2.msra.mxu0 0.0
      %1464 = vmatprep.subr.mxu0 0.0
      %1465 = vmatpush2.msra.mxu0 0.0
      %1466 = vmatprep.subr.mxu0 0.0
      %1467 = vmatpush2.msra.mxu0 0.0
      %1468 = vmatprep.subr.mxu0 0.0
      %1469 = vmatpush2.msra.mxu0 0.0
      %1470 = vmatprep.subr.mxu0 0.0
      %1471 = vmatpush2.msra.mxu0 0.0
      %1472 = vmatprep.subr.mxu0 0.0
      %1473 = vmatpush2.msra.mxu0 0.0
      %1474 = vmatprep.subr.mxu0 0.0
      %1475 = vmatpush2.msra.mxu0 0.0
      %1476 = vmatprep.subr.mxu0 0.0
      %1477 = vmatpush2.msra.mxu0 0.0
      %1478 = vmatprep.subr.mxu0 0.0
      %1479 = vmatpush2.msra.mxu0 0.0
      %1480 = vmatprep.subr.mxu0 0.0
      %1481 = vmatpush2.msra.mxu0 0.0
      %1482 = vmatprep.subr.mxu0 0.0
      %1483 = vmatpush2.msra.mxu0 0.0
      %1484 = vmatprep.mubr.f32.mxu0 0.0
      %v1485 = vand.u32 %v176, 4294901760
      %v1486 = vsub.f32 %v176, %v1485
      %1487 = vmatmul.mubr.f32.gmra.mxu0 %v1486
      %v1488 = vpop.f32.mrf.mxu0
      %v1489 = vadd.f32 %v1379, %v1488
      %v1490 = vpop.f32.mrf.mxu0
      %1491 = vmatprep.mubr.f32.mxu0 0.0
      %v1492 = vand.u32 %v177, 4294901760
      %v1493 = vsub.f32 %v177, %v1492
      %1494 = vmatmul.mubr.f32.gmra.mxu0 %v1493
      %v1495 = vpop.f32.mrf.mxu0
      %v1496 = vadd.f32 %v1385, %v1495
      %v1497 = vpop.f32.mrf.mxu0
      %1498 = vdwg.mxu0
      %1499 = vmatprep.subr.mxu0 0.0
      %v1500 = vand.u32 %v225, 4294901760
      %1501 = vmatpush1.msra.mxu0 %v1500
      %1502 = vmatprep.subr.mxu0 0.0
      %v1503 = vand.u32 %v222, 4294901760
      %1504 = vmatpush1.msra.mxu0 %v1503
      %1505 = vmatprep.subr.mxu0 0.0
      %v1506 = vand.u32 %v219, 4294901760
      %1507 = vmatpush1.msra.mxu0 %v1506
      %1508 = vmatprep.subr.mxu0 0.0
      %v1509 = vand.u32 %v216, 4294901760
      %1510 = vmatpush1.msra.mxu0 %v1509
      %1511 = vmatprep.subr.mxu0 0.0
      %v1512 = vand.u32 %v213, 4294901760
      %1513 = vmatpush1.msra.mxu0 %v1512
      %1514 = vmatprep.subr.mxu0 0.0
      %v1515 = vand.u32 %v210, 4294901760
      %1516 = vmatpush1.msra.mxu0 %v1515
      %1517 = vmatprep.subr.mxu0 0.0
      %v1518 = vand.u32 %v207, 4294901760
      %1519 = vmatpush1.msra.mxu0 %v1518
      %1520 = vmatprep.subr.mxu0 0.0
      %v1521 = vand.u32 %v204, 4294901760
      %1522 = vmatpush1.msra.mxu0 %v1521
      %1523 = vmatprep.subr.mxu0 0.0
      %v1524 = vand.u32 %v201, 4294901760
      %1525 = vmatpush1.msra.mxu0 %v1524
      %1526 = vmatprep.subr.mxu0 0.0
      %v1527 = vand.u32 %v198, 4294901760
      %1528 = vmatpush1.msra.mxu0 %v1527
      %1529 = vmatprep.subr.mxu0 0.0
      %v1530 = vand.u32 %v195, 4294901760
      %1531 = vmatpush1.msra.mxu0 %v1530
      %1532 = vmatprep.subr.mxu0 0.0
      %v1533 = vand.u32 %v192, 4294901760
      %1534 = vmatpush1.msra.mxu0 %v1533
      %1535 = vmatprep.subr.mxu0 0.0
      %v1536 = vand.u32 %v189, 4294901760
      %1537 = vmatpush1.msra.mxu0 %v1536
      %1538 = vmatprep.subr.mxu0 0.0
      %v1539 = vand.u32 %v186, 4294901760
      %1540 = vmatpush1.msra.mxu0 %v1539
      %1541 = vmatprep.subr.mxu0 0.0
      %v1542 = vand.u32 %v183, 4294901760
      %1543 = vmatpush1.msra.mxu0 %v1542
      %1544 = vmatprep.subr.mxu0 0.0
      %v1545 = vand.u32 %v180, 4294901760
      %1546 = vmatpush1.msra.mxu0 %v1545
      %1547 = vmatprep.subr.mxu0 0.0
      %1548 = vmatpush2.msra.mxu0 0.0
      %1549 = vmatprep.subr.mxu0 0.0
      %1550 = vmatpush2.msra.mxu0 0.0
      %1551 = vmatprep.subr.mxu0 0.0
      %1552 = vmatpush2.msra.mxu0 0.0
      %1553 = vmatprep.subr.mxu0 0.0
      %1554 = vmatpush2.msra.mxu0 0.0
      %1555 = vmatprep.subr.mxu0 0.0
      %1556 = vmatpush2.msra.mxu0 0.0
      %1557 = vmatprep.subr.mxu0 0.0
      %1558 = vmatpush2.msra.mxu0 0.0
      %1559 = vmatprep.subr.mxu0 0.0
      %1560 = vmatpush2.msra.mxu0 0.0
      %1561 = vmatprep.subr.mxu0 0.0
      %1562 = vmatpush2.msra.mxu0 0.0
      %1563 = vmatprep.subr.mxu0 0.0
      %1564 = vmatpush2.msra.mxu0 0.0
      %1565 = vmatprep.subr.mxu0 0.0
      %1566 = vmatpush2.msra.mxu0 0.0
      %1567 = vmatprep.subr.mxu0 0.0
      %1568 = vmatpush2.msra.mxu0 0.0
      %1569 = vmatprep.subr.mxu0 0.0
      %1570 = vmatpush2.msra.mxu0 0.0
      %1571 = vmatprep.subr.mxu0 0.0
      %1572 = vmatpush2.msra.mxu0 0.0
      %1573 = vmatprep.subr.mxu0 0.0
      %1574 = vmatpush2.msra.mxu0 0.0
      %1575 = vmatprep.subr.mxu0 0.0
      %1576 = vmatpush2.msra.mxu0 0.0
      %1577 = vmatprep.subr.mxu0 0.0
      %1578 = vmatpush2.msra.mxu0 0.0
      %1579 = vmatprep.mubr.f32.mxu0 0.0
      %v1580 = vand.u32 %v176, 4294901760
      %v1581 = vsub.f32 %v176, %v1580
      %v1582 = vand.u32 %v1581, 4294901760
      %1583 = vmatmul.mubr.f32.gmra.mxu0 %v1582
      %v1584 = vpop.f32.mrf.mxu0
      %v1585 = vadd.f32 %v1489, %v1584
      %v1586 = vpop.f32.mrf.mxu0
      %1587 = vmatprep.mubr.f32.mxu0 0.0
      %v1588 = vand.u32 %v177, 4294901760
      %v1589 = vsub.f32 %v177, %v1588
      %v1590 = vand.u32 %v1589, 4294901760
      %1591 = vmatmul.mubr.f32.gmra.mxu0 %v1590
      %v1592 = vpop.f32.mrf.mxu0
      %v1593 = vadd.f32 %v1496, %v1592
      %v1594 = vpop.f32.mrf.mxu0
      %1595 = vdwg.mxu0
      %1596 = vmatprep.subr.mxu0 0.0
      %v1597 = vand.u32 %v225, 4294901760
      %v1598 = vsub.f32 %v225, %v1597
      %v1599 = vand.u32 %v1598, 4294901760
      %1600 = vmatpush1.msra.mxu0 %v1599
      %1601 = vmatprep.subr.mxu0 0.0
      %v1602 = vand.u32 %v222, 4294901760
      %v1603 = vsub.f32 %v222, %v1602
      %v1604 = vand.u32 %v1603, 4294901760
      %1605 = vmatpush1.msra.mxu0 %v1604
      %1606 = vmatprep.subr.mxu0 0.0
      %v1607 = vand.u32 %v219, 4294901760
      %v1608 = vsub.f32 %v219, %v1607
      %v1609 = vand.u32 %v1608, 4294901760
      %1610 = vmatpush1.msra.mxu0 %v1609
      %1611 = vmatprep.subr.mxu0 0.0
      %v1612 = vand.u32 %v216, 4294901760
      %v1613 = vsub.f32 %v216, %v1612
      %v1614 = vand.u32 %v1613, 4294901760
      %1615 = vmatpush1.msra.mxu0 %v1614
      %1616 = vmatprep.subr.mxu0 0.0
      %v1617 = vand.u32 %v213, 4294901760
      %v1618 = vsub.f32 %v213, %v1617
      %v1619 = vand.u32 %v1618, 4294901760
      %1620 = vmatpush1.msra.mxu0 %v1619
      %1621 = vmatprep.subr.mxu0 0.0
      %v1622 = vand.u32 %v210, 4294901760
      %v1623 = vsub.f32 %v210, %v1622
      %v1624 = vand.u32 %v1623, 4294901760
      %1625 = vmatpush1.msra.mxu0 %v1624
      %1626 = vmatprep.subr.mxu0 0.0
      %v1627 = vand.u32 %v207, 4294901760
      %v1628 = vsub.f32 %v207, %v1627
      %v1629 = vand.u32 %v1628, 4294901760
      %1630 = vmatpush1.msra.mxu0 %v1629
      %1631 = vmatprep.subr.mxu0 0.0
      %v1632 = vand.u32 %v204, 4294901760
      %v1633 = vsub.f32 %v204, %v1632
      %v1634 = vand.u32 %v1633, 4294901760
      %1635 = vmatpush1.msra.mxu0 %v1634
      %1636 = vmatprep.subr.mxu0 0.0
      %v1637 = vand.u32 %v201, 4294901760
      %v1638 = vsub.f32 %v201, %v1637
      %v1639 = vand.u32 %v1638, 4294901760
      %1640 = vmatpush1.msra.mxu0 %v1639
      %1641 = vmatprep.subr.mxu0 0.0
      %v1642 = vand.u32 %v198, 4294901760
      %v1643 = vsub.f32 %v198, %v1642
      %v1644 = vand.u32 %v1643, 4294901760
      %1645 = vmatpush1.msra.mxu0 %v1644
      %1646 = vmatprep.subr.mxu0 0.0
      %v1647 = vand.u32 %v195, 4294901760
      %v1648 = vsub.f32 %v195, %v1647
      %v1649 = vand.u32 %v1648, 4294901760
      %1650 = vmatpush1.msra.mxu0 %v1649
      %1651 = vmatprep.subr.mxu0 0.0
      %v1652 = vand.u32 %v192, 4294901760
      %v1653 = vsub.f32 %v192, %v1652
      %v1654 = vand.u32 %v1653, 4294901760
      %1655 = vmatpush1.msra.mxu0 %v1654
      %1656 = vmatprep.subr.mxu0 0.0
      %v1657 = vand.u32 %v189, 4294901760
      %v1658 = vsub.f32 %v189, %v1657
      %v1659 = vand.u32 %v1658, 4294901760
      %1660 = vmatpush1.msra.mxu0 %v1659
      %1661 = vmatprep.subr.mxu0 0.0
      %v1662 = vand.u32 %v186, 4294901760
      %v1663 = vsub.f32 %v186, %v1662
      %v1664 = vand.u32 %v1663, 4294901760
      %1665 = vmatpush1.msra.mxu0 %v1664
      %1666 = vmatprep.subr.mxu0 0.0
      %v1667 = vand.u32 %v183, 4294901760
      %v1668 = vsub.f32 %v183, %v1667
      %v1669 = vand.u32 %v1668, 4294901760
      %1670 = vmatpush1.msra.mxu0 %v1669
      %1671 = vmatprep.subr.mxu0 0.0
      %v1672 = vand.u32 %v180, 4294901760
      %v1673 = vsub.f32 %v180, %v1672
      %v1674 = vand.u32 %v1673, 4294901760
      %1675 = vmatpush1.msra.mxu0 %v1674
      %1676 = vmatprep.subr.mxu0 0.0
      %1677 = vmatpush2.msra.mxu0 0.0
      %1678 = vmatprep.subr.mxu0 0.0
      %1679 = vmatpush2.msra.mxu0 0.0
      %1680 = vmatprep.subr.mxu0 0.0
      %1681 = vmatpush2.msra.mxu0 0.0
      %1682 = vmatprep.subr.mxu0 0.0
      %1683 = vmatpush2.msra.mxu0 0.0
      %1684 = vmatprep.subr.mxu0 0.0
      %1685 = vmatpush2.msra.mxu0 0.0
      %1686 = vmatprep.subr.mxu0 0.0
      %1687 = vmatpush2.msra.mxu0 0.0
      %1688 = vmatprep.subr.mxu0 0.0
      %1689 = vmatpush2.msra.mxu0 0.0
      %1690 = vmatprep.subr.mxu0 0.0
      %1691 = vmatpush2.msra.mxu0 0.0
      %1692 = vmatprep.subr.mxu0 0.0
      %1693 = vmatpush2.msra.mxu0 0.0
      %1694 = vmatprep.subr.mxu0 0.0
      %1695 = vmatpush2.msra.mxu0 0.0
      %1696 = vmatprep.subr.mxu0 0.0
      %1697 = vmatpush2.msra.mxu0 0.0
      %1698 = vmatprep.subr.mxu0 0.0
      %1699 = vmatpush2.msra.mxu0 0.0
      %1700 = vmatprep.subr.mxu0 0.0
      %1701 = vmatpush2.msra.mxu0 0.0
      %1702 = vmatprep.subr.mxu0 0.0
      %1703 = vmatpush2.msra.mxu0 0.0
      %1704 = vmatprep.subr.mxu0 0.0
      %1705 = vmatpush2.msra.mxu0 0.0
      %1706 = vmatprep.subr.mxu0 0.0
      %1707 = vmatpush2.msra.mxu0 0.0
      %1708 = vmatprep.mubr.f32.mxu0 0.0
      %v1709 = vand.u32 %v176, 4294901760
      %1710 = vmatmul.mubr.f32.gmra.mxu0 %v1709
      %v1711 = vpop.f32.mrf.mxu0
      %v1712 = vadd.f32 %v1585, %v1711
      %v1713 = vpop.f32.mrf.mxu0
      %1714 = vmatprep.mubr.f32.mxu0 0.0
      %v1715 = vand.u32 %v177, 4294901760
      %1716 = vmatmul.mubr.f32.gmra.mxu0 %v1715
      %v1717 = vpop.f32.mrf.mxu0
      %v1718 = vadd.f32 %v1593, %v1717
      %v1719 = vpop.f32.mrf.mxu0
      %1720 = vdwg.mxu0
      %1721 = vmatprep.subr.mxu0 0.0
      %v1722 = vand.u32 %v225, 4294901760
      %1723 = vmatpush1.msra.mxu0 %v1722
      %1724 = vmatprep.subr.mxu0 0.0
      %v1725 = vand.u32 %v222, 4294901760
      %1726 = vmatpush1.msra.mxu0 %v1725
      %1727 = vmatprep.subr.mxu0 0.0
      %v1728 = vand.u32 %v219, 4294901760
      %1729 = vmatpush1.msra.mxu0 %v1728
      %1730 = vmatprep.subr.mxu0 0.0
      %v1731 = vand.u32 %v216, 4294901760
      %1732 = vmatpush1.msra.mxu0 %v1731
      %1733 = vmatprep.subr.mxu0 0.0
      %v1734 = vand.u32 %v213, 4294901760
      %1735 = vmatpush1.msra.mxu0 %v1734
      %1736 = vmatprep.subr.mxu0 0.0
      %v1737 = vand.u32 %v210, 4294901760
      %1738 = vmatpush1.msra.mxu0 %v1737
      %1739 = vmatprep.subr.mxu0 0.0
      %v1740 = vand.u32 %v207, 4294901760
      %1741 = vmatpush1.msra.mxu0 %v1740
      %1742 = vmatprep.subr.mxu0 0.0
      %v1743 = vand.u32 %v204, 4294901760
      %1744 = vmatpush1.msra.mxu0 %v1743
      %1745 = vmatprep.subr.mxu0 0.0
      %v1746 = vand.u32 %v201, 4294901760
      %1747 = vmatpush1.msra.mxu0 %v1746
      %1748 = vmatprep.subr.mxu0 0.0
      %v1749 = vand.u32 %v198, 4294901760
      %1750 = vmatpush1.msra.mxu0 %v1749
      %1751 = vmatprep.subr.mxu0 0.0
      %v1752 = vand.u32 %v195, 4294901760
      %1753 = vmatpush1.msra.mxu0 %v1752
      %1754 = vmatprep.subr.mxu0 0.0
      %v1755 = vand.u32 %v192, 4294901760
      %1756 = vmatpush1.msra.mxu0 %v1755
      %1757 = vmatprep.subr.mxu0 0.0
      %v1758 = vand.u32 %v189, 4294901760
      %1759 = vmatpush1.msra.mxu0 %v1758
      %1760 = vmatprep.subr.mxu0 0.0
      %v1761 = vand.u32 %v186, 4294901760
      %1762 = vmatpush1.msra.mxu0 %v1761
      %1763 = vmatprep.subr.mxu0 0.0
      %v1764 = vand.u32 %v183, 4294901760
      %1765 = vmatpush1.msra.mxu0 %v1764
      %1766 = vmatprep.subr.mxu0 0.0
      %v1767 = vand.u32 %v180, 4294901760
      %1768 = vmatpush1.msra.mxu0 %v1767
      %1769 = vmatprep.subr.mxu0 0.0
      %1770 = vmatpush2.msra.mxu0 0.0
      %1771 = vmatprep.subr.mxu0 0.0
      %1772 = vmatpush2.msra.mxu0 0.0
      %1773 = vmatprep.subr.mxu0 0.0
      %1774 = vmatpush2.msra.mxu0 0.0
      %1775 = vmatprep.subr.mxu0 0.0
      %1776 = vmatpush2.msra.mxu0 0.0
      %1777 = vmatprep.subr.mxu0 0.0
      %1778 = vmatpush2.msra.mxu0 0.0
      %1779 = vmatprep.subr.mxu0 0.0
      %1780 = vmatpush2.msra.mxu0 0.0
      %1781 = vmatprep.subr.mxu0 0.0
      %1782 = vmatpush2.msra.mxu0 0.0
      %1783 = vmatprep.subr.mxu0 0.0
      %1784 = vmatpush2.msra.mxu0 0.0
      %1785 = vmatprep.subr.mxu0 0.0
      %1786 = vmatpush2.msra.mxu0 0.0
      %1787 = vmatprep.subr.mxu0 0.0
      %1788 = vmatpush2.msra.mxu0 0.0
      %1789 = vmatprep.subr.mxu0 0.0
      %1790 = vmatpush2.msra.mxu0 0.0
      %1791 = vmatprep.subr.mxu0 0.0
      %1792 = vmatpush2.msra.mxu0 0.0
      %1793 = vmatprep.subr.mxu0 0.0
      %1794 = vmatpush2.msra.mxu0 0.0
      %1795 = vmatprep.subr.mxu0 0.0
      %1796 = vmatpush2.msra.mxu0 0.0
      %1797 = vmatprep.subr.mxu0 0.0
      %1798 = vmatpush2.msra.mxu0 0.0
      %1799 = vmatprep.subr.mxu0 0.0
      %1800 = vmatpush2.msra.mxu0 0.0
      %1801 = vmatprep.mubr.f32.mxu0 0.0
      %v1802 = vand.u32 %v176, 4294901760
      %1803 = vmatmul.mubr.f32.gmra.mxu0 %v1802
      %v1804 = vpop.f32.mrf.mxu0
      %v1805 = vadd.f32 %v1712, %v1804
      %v1806 = vpop.f32.mrf.mxu0
      %1807 = vmatprep.mubr.f32.mxu0 0.0
      %v1808 = vand.u32 %v177, 4294901760
      %1809 = vmatmul.mubr.f32.gmra.mxu0 %v1808
      %v1810 = vpop.f32.mrf.mxu0
      %v1811 = vadd.f32 %v1718, %v1810
      %v1812 = vpop.f32.mrf.mxu0
      %1813 = vdwg.mxu0
      %v1814 = vld [vmem:[%s2] sm:$0xff]
      %v1815 = vld [vmem:[%s2 + $0x8] sm:$0xff]
      %v1816 = vrot.slane %v1119, 7
      %v1817 = vrot.slane %v1126, 7
      %v1818 = vlaneseq
      %v1819 = vshrl.u32 %v1818, 7
      %vm1820 = vcmp.lt.s32.totalorder %v1819, 1
      %v1821 = vsel %vm1820, %v1816, %v1817
      %v1822 = vsel %vm1820, %v1817, %v1816
      %1824 = vset.pattern.permute.xlu0 0
      %1825 = vperm.xlu0 %1824, %v1814
      %v1826 = vpop.permute.xlu0 %1825
      %1829 = vset.pattern.permute.xlu0 0
      %1830 = vperm.xlu0 %1829, %v1815
      %v1831 = vpop.permute.xlu0 %1830
      %v1833 = vmul.f32 %v1826, %v1822
      %v1834 = vmul.f32 %v1831, %v1821
      %v1835 = vadd.f32 %v1121, %v1833
      %v1836 = vadd.f32 %v1128, %v1834
      %v1837 = vrot.slane %v1805, 1
      %v1838 = vrot.slane %v1811, 1
      %vm1839 = vcmp.lt.s32.totalorder %v1819, 7
      %v1840 = vsel %vm1839, %v1837, %v1838
      %v1841 = vsel %vm1839, %v1838, %v1837
      %1842 = vset.pattern.permute.xlu0 1
      %1843 = vperm.xlu0 %1842, %v1814
      %v1844 = vpop.permute.xlu0 %1843
      %1846 = vset.pattern.permute.xlu0 1
      %1847 = vperm.xlu0 %1846, %v1815
      %v1848 = vpop.permute.xlu0 %1847
      %v1850 = vmul.f32 %v1844, %v1840
      %v1851 = vmul.f32 %v1848, %v1841
      %v1852 = vadd.f32 %v1835, %v1850
      %v1853 = vadd.f32 %v1836, %v1851
      %v1854 = vlaneseq
      %v1855 = vand.u32 %v1854, 127
      %vm1856 = vcmp.lt.s32.totalorder %v1855, 8
      %v1857 = vsel %vm1856, 1, 0
      %v1858 = vcvt.s32.f32 %v1857
      %vm1859 = vcmp.ge.s32.totalorder %v1855, 120
      %v1860 = vsel %vm1859, 1, 0
      %v1861 = vcvt.s32.f32 %v1860
      %1862 = vset.pattern.permute.xlu0 2
      %1863 = vperm.xlu0 %1862, %v1814
      %v1864 = vpop.permute.xlu0 %1863
      %1866 = vset.pattern.permute.xlu0 2
      %1867 = vperm.xlu0 %1866, %v1815
      %v1868 = vpop.permute.xlu0 %1867
      %v1870 = vadd.f32 %v1852, %v1864
      %v1871 = vadd.f32 %v1853, %v1868
      %1872 = vset.pattern.permute.xlu0 3
      %1873 = vperm.xlu0 %1872, %v1814
      %v1874 = vpop.permute.xlu0 %1873
      %1876 = vset.pattern.permute.xlu0 3
      %1877 = vperm.xlu0 %1876, %v1815
      %v1878 = vpop.permute.xlu0 %1877
      %v1880 = vmul.f32 %v1874, %v1858
      %v1881 = vmul.f32 %v1878, %v1858
      %v1882 = vadd.f32 %v1870, %v1880
      %v1883 = vadd.f32 %v1871, %v1881
      %1884 = vset.pattern.permute.xlu0 4
      %1885 = vperm.xlu0 %1884, %v1814
      %v1886 = vpop.permute.xlu0 %1885
      %1888 = vset.pattern.permute.xlu0 4
      %1889 = vperm.xlu0 %1888, %v1815
      %v1890 = vpop.permute.xlu0 %1889
      %v1892 = vmul.f32 %v1886, %v1861
      %v1893 = vmul.f32 %v1890, %v1861
      %v1894 = vadd.f32 %v1882, %v1892
      %v1895 = vadd.f32 %v1883, %v1893
      %v1896 = vmul.f32 %v1894, 0.5
      %v1897 = vmul.f32 %v1895, 0.5
      %v1898 = vtanh.pop %v1896
      %v1899 = vtanh.pop %v1897
      %v1900 = vmul.f32 %v1898, 0.5
      %v1901 = vmul.f32 %v1899, 0.5
      %v1902 = vadd.f32 %v1900, 0.5
      %v1903 = vadd.f32 %v1901, 0.5
      %v1904 = vmul.f32 %v174, %v1902
      %v1905 = vmul.f32 %v175, %v1903
      %1906 = vst [vmem:[%s172] sm:$0xff] %v1904
      %1907 = vst [vmem:[%s172 + $0x8] sm:$0xff] %v1905
      %s1908 = smul.u32 2, %s14
      %p1909 = scmp.lt.s32.totalorder %s1908, 3
      %s1910 = scalar_select %p1909, %s1908, 3
      %s1911 = smul.addr %s1910, 8
      %s1912 = scalar_lea.vmem %s3, %s1911
      // Predicated region
      $region33: #{csam_pallas.1} parent=31 // pred_check
        %p1913 = pneg %p100
      $region34: #{csam_pallas.1} parent=31 // pred_check_branch
        %1915 = sbr.rel (%p1913) target = $region36
      $region35: #{csam_pallas.1} parent=31 // pred_region
        %s1916 = smul.u32 2, %s14
      $region36: #{csam_pallas.1} parent=31 // pred_fallthru
        _
    $region32: #{csam_pallas.1} parent=5 // pred_fallthru
      _
    %p1917 = scmp.le.s32.totalorder 2, %s9
    // Predicated region
    $region37: #{csam_pallas.1} parent=5 // pred_check
      %p1918 = pneg %p1917
    $region38: #{csam_pallas.1} parent=5 // pred_check_branch
      %1920 = sbr.rel (%p1918) target = $region40
    $region39: #{csam_pallas.1} parent=5 // pred_region
      %s1921 = ssub.s32 %s9, 2
      // Predicated region
      $region41: #{csam_pallas.1} parent=39 // pred_check
        %p1922 = pneg %p106
      $region42: #{csam_pallas.1} parent=39 // pred_check_branch
        %1924 = sbr.rel (%p1922) target = $region44
      $region43: #{csam_pallas.1} parent=39 // pred_region
        %s1925 = smul.u32 2, %s15
        %p1926 = scmp.lt.s32.totalorder %s1925, 3
        %s1927 = scalar_select %p1926, %s1925, 3
        %s1928 = smul.addr %s1927, 8
        %s1929 = scalar_lea.vmem %s3, %s1928
      $region44: #{csam_pallas.1} parent=39 // pred_fallthru
        _
    $region40: #{csam_pallas.1} parent=5 // pred_fallthru
      _
  $region6: #{csam_pallas.1} parent=0 // loop_footer
    %s13 = sadd.s32 1, %s9
  $region7: #{csam_pallas.1} parent=0 // loop_footer_branch
    %8 = sbr.rel target = $region3
  $region8: #{csam_pallas.1} parent=0 // loop_exit
    _

</llo_original>
